<compile_context>
chip_gen: v7x
topology: tpu7x:2x2x1
jax: 0.10.0
libtpu: 0.0.40
codegen_flags: <defaults>
</compile_context>

<pallas_src>
import jax
import jax.numpy as jnp
from jax.experimental import pallas as pl
from jax.experimental.pallas import tpu as pltpu

BN_EPS = 1e-5
D_IN, D_H1, D_H2, D_OUT = 980, 400, 50, 10


def _bn_relu(h, gamma, beta, col_scale=None, *, relu=True):
    """PyTorch BatchNorm1d (training mode) + optional ReLU, in f32.

    If `col_scale` is given, `h` is the *unscaled* matmul output of an int8
    weight matrix (true activations = h * col_scale per column); the dequant
    scale is folded into the BN scale/shift, so no (B, F) dequant pass exists.
    One-pass stats (sum, sum-of-squares) + fused scale/shift (one FMA/elem).
    """
    inv_n = 1.0 / h.shape[0]
    s = jnp.sum(h, axis=0, keepdims=True)              # (1, F)
    s2 = jnp.sum(h * h, axis=0, keepdims=True)          # (1, F)
    mean = s * inv_n
    var = jnp.maximum(s2 * inv_n - mean * mean, 0.0)     # biased variance
    if col_scale is not None:
        var = var * (col_scale * col_scale)              # variance in true units
        scale = col_scale * gamma * jax.lax.rsqrt(var + BN_EPS)
    else:
        scale = gamma * jax.lax.rsqrt(var + BN_EPS)
    shift = beta - mean * scale
    y = h * scale + shift
    return jnp.maximum(y, 0.0) if relu else y


def classifier_kernel(
    x_ref,
    w1q_ref, s1_ref, g1_ref, be1_ref,
    w2_ref, g2_ref, be2_ref,
    w3_ref, b3_ref,
    o_ref,
):
    x = x_ref[...]
    if x.dtype != jnp.bfloat16:          # accept bf16 x from upstream for free
        x = x.astype(jnp.bfloat16)

    # fc1: Linear(980,400).  w1 stored int8 (per-output-channel scales s1);
    # int8->bf16 cast is exact, dequant scale folded into BN1 below.
    # Bias b1 omitted: exactly cancelled by training-mode BN mean subtraction.
    w1 = w1q_ref[...].astype(jnp.bfloat16)
    h1q = jnp.dot(x, w1, preferred_element_type=jnp.float32)       # = h1 / s1
    h1 = _bn_relu(h1q, g1_ref[...], be1_ref[...], col_scale=s1_ref[...])

    # fc2: Linear(400,50) [bias omitted: same cancellation] + BN + ReLU
    h2 = jnp.dot(h1.astype(jnp.bfloat16), w2_ref[...],
                 preferred_element_type=jnp.float32)
    h2 = _bn_relu(h2, g2_ref[...], be2_ref[...])

    # fc3: Linear(50,10)  (bias kept: no BN after it)
    out = jnp.dot(h2.astype(jnp.bfloat16), w3_ref[...],
                  preferred_element_type=jnp.float32) + b3_ref[...]

    o_ref[...] = out.astype(o_ref.dtype)


def classifier_forward(x, params):
    """x: (B, 980) float32 or bfloat16 -> (B, 10) float32.  B > 1 (BN stats)."""
    B = x.shape[0]
    vmem = pl.BlockSpec(memory_space=pltpu.MemorySpace.VMEM)
    flops = 2 * B * (D_IN * D_H1 + D_H1 * D_H2 + D_H2 * D_OUT)
    bytes_accessed = (
        D_IN * D_H1 * 1                      # w1 int8
        + D_H1 * D_H2 * 2 + D_H2 * D_OUT * 2  # w2, w3 bf16
        + (3 * D_H1 + 2 * D_H2 + D_OUT) * 4   # s1,g1,be1,g2,be2,b3
        + B * D_IN * x.dtype.itemsize         # x
        + B * D_OUT * 4)                      # out
    return pl.pallas_call(
        classifier_kernel,
        out_shape=jax.ShapeDtypeStruct((B, D_OUT), jnp.float32),
        in_specs=[vmem] * 10,
        out_specs=vmem,
        cost_estimate=pl.CostEstimate(
            flops=flops, transcendentals=D_H1 + D_H2,
            bytes_accessed=bytes_accessed),
        compiler_params=pltpu.CompilerParams(vmem_limit_bytes=32 * 1024 * 1024),
    )(x,
      params["w1q"], params["s1"], params["g1"], params["be1"],
      params["w2"], params["g2"], params["be2"],
      params["w3"], params["b3"])


def init_params(key):
    """Synthetic init mirroring nn.Linear / nn.BatchNorm1d shapes.

    Linear W, b ~ U(-1/sqrt(fan_in), 1/sqrt(fan_in)); BN gamma=1, beta=0.
    Weights are stored transposed ([in, out]).  w1 is quantized to int8 with
    per-output-channel scales (halves the dominant DMA); w2/w3 are bf16.
    b1/b2 are kept for the reference check but NOT fed to the kernel (they
    cancel under training-mode BatchNorm).
    """
    dims = [(D_IN, D_H1), (D_H1, D_H2), (D_H2, D_OUT)]
    keys = jax.random.split(key, 2 * len(dims))
    lin = []
    for li, (din, dout) in enumerate(dims):
        bound = 1.0 / (din ** 0.5)
        w = jax.random.uniform(keys[2 * li], (din, dout), jnp.float32, -bound, bound)
        b = jax.random.uniform(keys[2 * li + 1], (1, dout), jnp.float32, -bound, bound)
        lin.append((w, b))
    (w1, b1), (w2, b2), (w3, b3) = lin

    # Per-output-channel symmetric int8 quantization of w1.
    s1 = jnp.maximum(jnp.max(jnp.abs(w1), axis=0, keepdims=True), 1e-12) / 127.0
    w1q = jnp.clip(jnp.round(w1 / s1), -127, 127).astype(jnp.int8)

    return {
        "w1q": w1q, "s1": s1, "b1": b1,
        "g1": jnp.ones((1, D_H1), jnp.float32), "be1": jnp.zeros((1, D_H1), jnp.float32),
        "w2": w2.astype(jnp.bfloat16), "b2": b2,
        "g2": jnp.ones((1, D_H2), jnp.float32), "be2": jnp.zeros((1, D_H2), jnp.float32),
        "w3": w3.astype(jnp.bfloat16), "b3": b3,
    }


def _reference_forward(x, params):
    """Pure-JAX reference in the standard PyTorch form (Linear WITH biases,
    two-pass BatchNorm, ReLU), using the dequantized w1 and bf16 matmul
    operands / f32 accumulation to mirror the kernel's MXU dtype choice.
    It verifies both the b1/b2 cancellation and the folded int8 dequant."""
    w1 = params["w1q"].astype(jnp.float32) * params["s1"]

    def dot(a, w):
        return jnp.dot(a.astype(jnp.bfloat16), w.astype(jnp.bfloat16),
                       preferred_element_type=jnp.float32)

    def bn(h, g, b):
        m = h.mean(0, keepdims=True)
        v = h.var(0, keepdims=True)  # biased (ddof=0) == PyTorch training-mode norm
        return (h - m) * jax.lax.rsqrt(v + BN_EPS) * g + b

    h = dot(x, w1) + params["b1"]
    h = jnp.maximum(bn(h, params["g1"], params["be1"]), 0.0)
    h = dot(h, params["w2"]) + params["b2"]
    h = jnp.maximum(bn(h, params["g2"], params["be2"]), 0.0)
    return dot(h, params["w3"]) + params["b3"]


if __name__ == "__main__":
    key = jax.random.PRNGKey(0)
    k_param, k_x = jax.random.split(key)

    B = 8  # > 1 required for BatchNorm1d training-mode statistics
    params = init_params(k_param)
    x = jax.random.normal(k_x, (B, D_IN), jnp.float32)

    out = classifier_forward(x, params)
    jax.block_until_ready(out)

    ref = _reference_forward(x, params)
    assert out.shape == (B, D_OUT)
    max_err = float(jnp.max(jnp.abs(out - ref)))
    assert jnp.allclose(out, ref, atol=2e-2, rtol=2e-2), f"max abs err = {max_err}"

    print("KERNEL_OK")
</pallas_src>

<mosaic_0001>
module attributes {stable_mosaic.version = 11 : i64} {
  func.func @classifier_kernel(%arg0: memref<8x980xf32, #tpu.memory_space<vmem>>, %arg1: memref<980x400xi8, #tpu.memory_space<vmem>>, %arg2: memref<1x400xf32, #tpu.memory_space<vmem>>, %arg3: memref<1x400xf32, #tpu.memory_space<vmem>>, %arg4: memref<1x400xf32, #tpu.memory_space<vmem>>, %arg5: memref<400x50xbf16, #tpu.memory_space<vmem>>, %arg6: memref<1x50xf32, #tpu.memory_space<vmem>>, %arg7: memref<1x50xf32, #tpu.memory_space<vmem>>, %arg8: memref<50x10xbf16, #tpu.memory_space<vmem>>, %arg9: memref<1x10xf32, #tpu.memory_space<vmem>>, %arg10: memref<8x10xf32, #tpu.memory_space<vmem>>) attributes {dimension_semantics = [], scalar_prefetch = 0 : i64, scratch_operands = 0 : i64, tpu.core_type = #tpu.core_type<tc>} {
    %c0 = arith.constant 0 : index
    %c0_0 = arith.constant 0 : index
    %0 = vector.load %arg0[%c0, %c0_0] : memref<8x980xf32, #tpu.memory_space<vmem>>, vector<8x980xf32>
    %1 = arith.truncf %0 : vector<8x980xf32> to vector<8x980xbf16>
    %c0_1 = arith.constant 0 : index
    %c0_2 = arith.constant 0 : index
    %2 = vector.load %arg1[%c0_1, %c0_2] : memref<980x400xi8, #tpu.memory_space<vmem>>, vector<980x400xi8>
    %3 = arith.sitofp %2 : vector<980x400xi8> to vector<980x400xbf16>
    %cst = arith.constant dense<0.000000e+00> : vector<8x400xf32>
    %4 = tpu.matmul %1, %3, %cst {dimension_numbers = #tpu.dot_dimension_numbers<[1], [0], [0], [1], [0, 0, 1, 1], [], []>} : vector<8x980xbf16>, vector<980x400xbf16>, vector<8x400xf32> -> vector<8x400xf32>
    %c0_3 = arith.constant 0 : index
    %c0_4 = arith.constant 0 : index
    %5 = vector.load %arg3[%c0_3, %c0_4] : memref<1x400xf32, #tpu.memory_space<vmem>>, vector<1x400xf32>
    %c0_5 = arith.constant 0 : index
    %c0_6 = arith.constant 0 : index
    %6 = vector.load %arg4[%c0_5, %c0_6] : memref<1x400xf32, #tpu.memory_space<vmem>>, vector<1x400xf32>
    %c0_7 = arith.constant 0 : index
    %c0_8 = arith.constant 0 : index
    %7 = vector.load %arg2[%c0_7, %c0_8] : memref<1x400xf32, #tpu.memory_space<vmem>>, vector<1x400xf32>
    %cst_9 = arith.constant dense<0.000000e+00> : vector<400xf32>
    %8 = vector.multi_reduction <add>, %4, %cst_9 [0] : vector<8x400xf32> to vector<400xf32>
    %9 = vector.shape_cast %8 : vector<400xf32> to vector<1x400xf32>
    %10 = arith.mulf %4, %4 : vector<8x400xf32>
    %cst_10 = arith.constant dense<0.000000e+00> : vector<400xf32>
    %11 = vector.multi_reduction <add>, %10, %cst_10 [0] : vector<8x400xf32> to vector<400xf32>
    %12 = vector.shape_cast %11 : vector<400xf32> to vector<1x400xf32>
    %cst_11 = arith.constant 1.250000e-01 : f32
    %13 = vector.broadcast %cst_11 : f32 to vector<1x400xf32>
    %14 = arith.mulf %9, %13 : vector<1x400xf32>
    %cst_12 = arith.constant 1.250000e-01 : f32
    %15 = vector.broadcast %cst_12 : f32 to vector<1x400xf32>
    %16 = arith.mulf %12, %15 : vector<1x400xf32>
    %17 = arith.mulf %14, %14 : vector<1x400xf32>
    %18 = arith.subf %16, %17 : vector<1x400xf32>
    %cst_13 = arith.constant 0.000000e+00 : f32
    %19 = vector.broadcast %cst_13 : f32 to vector<1x400xf32>
    %20 = arith.maximumf %18, %19 : vector<1x400xf32>
    %21 = arith.mulf %7, %7 : vector<1x400xf32>
    %22 = arith.mulf %20, %21 : vector<1x400xf32>
    %23 = arith.mulf %7, %5 : vector<1x400xf32>
    %cst_14 = arith.constant 9.99999974E-6 : f32
    %24 = vector.broadcast %cst_14 : f32 to vector<1x400xf32>
    %25 = arith.addf %22, %24 : vector<1x400xf32>
    %26 = math.rsqrt %25 : vector<1x400xf32>
    %27 = arith.mulf %23, %26 : vector<1x400xf32>
    %28 = arith.mulf %14, %27 : vector<1x400xf32>
    %29 = arith.subf %6, %28 : vector<1x400xf32>
    %30 = vector.broadcast %27 : vector<1x400xf32> to vector<8x400xf32>
    %31 = arith.mulf %4, %30 : vector<8x400xf32>
    %32 = vector.broadcast %29 : vector<1x400xf32> to vector<8x400xf32>
    %33 = arith.addf %31, %32 : vector<8x400xf32>
    %cst_15 = arith.constant 0.000000e+00 : f32
    %34 = vector.broadcast %cst_15 : f32 to vector<8x400xf32>
    %35 = arith.maximumf %33, %34 : vector<8x400xf32>
    %36 = arith.truncf %35 : vector<8x400xf32> to vector<8x400xbf16>
    %c0_16 = arith.constant 0 : index
    %c0_17 = arith.constant 0 : index
    %37 = vector.load %arg5[%c0_16, %c0_17] : memref<400x50xbf16, #tpu.memory_space<vmem>>, vector<400x50xbf16>
    %cst_18 = arith.constant dense<0.000000e+00> : vector<8x50xf32>
    %38 = tpu.matmul %36, %37, %cst_18 {dimension_numbers = #tpu.dot_dimension_numbers<[1], [0], [0], [1], [0, 0, 1, 1], [], []>} : vector<8x400xbf16>, vector<400x50xbf16>, vector<8x50xf32> -> vector<8x50xf32>
    %c0_19 = arith.constant 0 : index
    %c0_20 = arith.constant 0 : index
    %39 = vector.load %arg6[%c0_19, %c0_20] : memref<1x50xf32, #tpu.memory_space<vmem>>, vector<1x50xf32>
    %c0_21 = arith.constant 0 : index
    %c0_22 = arith.constant 0 : index
    %40 = vector.load %arg7[%c0_21, %c0_22] : memref<1x50xf32, #tpu.memory_space<vmem>>, vector<1x50xf32>
    %cst_23 = arith.constant dense<0.000000e+00> : vector<50xf32>
    %41 = vector.multi_reduction <add>, %38, %cst_23 [0] : vector<8x50xf32> to vector<50xf32>
    %42 = vector.shape_cast %41 : vector<50xf32> to vector<1x50xf32>
    %43 = arith.mulf %38, %38 : vector<8x50xf32>
    %cst_24 = arith.constant dense<0.000000e+00> : vector<50xf32>
    %44 = vector.multi_reduction <add>, %43, %cst_24 [0] : vector<8x50xf32> to vector<50xf32>
    %45 = vector.shape_cast %44 : vector<50xf32> to vector<1x50xf32>
    %cst_25 = arith.constant 1.250000e-01 : f32
    %46 = vector.broadcast %cst_25 : f32 to vector<1x50xf32>
    %47 = arith.mulf %42, %46 : vector<1x50xf32>
    %cst_26 = arith.constant 1.250000e-01 : f32
    %48 = vector.broadcast %cst_26 : f32 to vector<1x50xf32>
    %49 = arith.mulf %45, %48 : vector<1x50xf32>
    %50 = arith.mulf %47, %47 : vector<1x50xf32>
    %51 = arith.subf %49, %50 : vector<1x50xf32>
    %cst_27 = arith.constant 0.000000e+00 : f32
    %52 = vector.broadcast %cst_27 : f32 to vector<1x50xf32>
    %53 = arith.maximumf %51, %52 : vector<1x50xf32>
    %cst_28 = arith.constant 9.99999974E-6 : f32
    %54 = vector.broadcast %cst_28 : f32 to vector<1x50xf32>
    %55 = arith.addf %53, %54 : vector<1x50xf32>
    %56 = math.rsqrt %55 : vector<1x50xf32>
    %57 = arith.mulf %39, %56 : vector<1x50xf32>
    %58 = arith.mulf %47, %57 : vector<1x50xf32>
    %59 = arith.subf %40, %58 : vector<1x50xf32>
    %60 = vector.broadcast %57 : vector<1x50xf32> to vector<8x50xf32>
    %61 = arith.mulf %38, %60 : vector<8x50xf32>
    %62 = vector.broadcast %59 : vector<1x50xf32> to vector<8x50xf32>
    %63 = arith.addf %61, %62 : vector<8x50xf32>
    %cst_29 = arith.constant 0.000000e+00 : f32
    %64 = vector.broadcast %cst_29 : f32 to vector<8x50xf32>
    %65 = arith.maximumf %63, %64 : vector<8x50xf32>
    %66 = arith.truncf %65 : vector<8x50xf32> to vector<8x50xbf16>
    %c0_30 = arith.constant 0 : index
    %c0_31 = arith.constant 0 : index
    %67 = vector.load %arg8[%c0_30, %c0_31] : memref<50x10xbf16, #tpu.memory_space<vmem>>, vector<50x10xbf16>
    %cst_32 = arith.constant dense<0.000000e+00> : vector<8x10xf32>
    %68 = tpu.matmul %66, %67, %cst_32 {dimension_numbers = #tpu.dot_dimension_numbers<[1], [0], [0], [1], [0, 0, 1, 1], [], []>} : vector<8x50xbf16>, vector<50x10xbf16>, vector<8x10xf32> -> vector<8x10xf32>
    %c0_33 = arith.constant 0 : index
    %c0_34 = arith.constant 0 : index
    %69 = vector.load %arg9[%c0_33, %c0_34] : memref<1x10xf32, #tpu.memory_space<vmem>>, vector<1x10xf32>
    %70 = vector.broadcast %69 : vector<1x10xf32> to vector<8x10xf32>
    %71 = arith.addf %68, %70 : vector<8x10xf32>
    %c0_35 = arith.constant 0 : index
    %c0_36 = arith.constant 0 : index
    %72 = vector.load %arg10[%c0_35, %c0_36] : memref<8x10xf32, #tpu.memory_space<vmem>>, vector<8x10xf32>
    tpu.vector_store %arg10[%c0_35, %c0_36], %71 {strides = array<i32>} : memref<8x10xf32, #tpu.memory_space<vmem>>, vector<8x10xf32>,
    return
  }
}

</mosaic_0001>

<llo_original>
// kernel: tpu_custom_call.1
$region0: #{tpu_custom_call.1}
  #allocation0 [shape = 'u32[]', space=smem, size = 0x4, offset = 0x4, fixed_abs, tag = 'smem constant byte address 0x4 - core index']
  #allocation1 [shape = 'u32[144,128]{1,0:T(1,128)}', space=vmem, size = 0x12000, scoped, tag = 'internal scratch']
  %s0 = inlined_call_operand.vmem [shape: f32[8,980], index: 0, kind: input, shape index: {}]
  %s1 = inlined_call_operand.vmem [shape: s8[980,400], index: 1, kind: input, shape index: {}]
  %s2 = inlined_call_operand.vmem [shape: f32[1,400], index: 2, kind: input, shape index: {}]
  %s3 = inlined_call_operand.vmem [shape: f32[1,400], index: 3, kind: input, shape index: {}]
  %s4 = inlined_call_operand.vmem [shape: f32[1,400], index: 4, kind: input, shape index: {}]
  %s5 = inlined_call_operand.vmem [shape: bf16[400,50], index: 5, kind: input, shape index: {}]
  %s6 = inlined_call_operand.vmem [shape: f32[1,50], index: 6, kind: input, shape index: {}]
  %s7 = inlined_call_operand.vmem [shape: f32[1,50], index: 7, kind: input, shape index: {}]
  %s8 = inlined_call_operand.vmem [shape: bf16[50,10], index: 8, kind: input, shape index: {}]
  %s9 = inlined_call_operand.vmem [shape: f32[1,10], index: 9, kind: input, shape index: {}]
  %s10 = inlined_call_operand.hbm [shape: f32[8,10], index: 10, kind: output, shape index: {}]
  %s11 = sld [smem:[#allocation0]]
  $region50: #{tpu_custom_call.1} parent=0
    _
  %s13 = ssub.s32 1, %s11
  %s14 = scalar_select 0, %s13, %s11
  $region1: #{tpu_custom_call.1} parent=0
    #allocation2 [shape = 'u8[4096]{0}', space=vmem, size = 0x1000, scoped, tag = 'output window, operand 0, single buffered']
    #allocation3 [shape = 's32[1]{0}', space=sflag, size = 0x4, scoped, tag = 'scoped memory for tpu_custom_call.1']
    %15 = vsyncpa [#allocation3], 0
    // Predicated region
    $region2: #{tpu_custom_call.1} parent=1 // pred_check
      _
    $region3: #{tpu_custom_call.1} parent=1 // pred_check_branch
      %17 = sbr.rel (0) target = $region5
    $region4: #{tpu_custom_call.1} parent=1 // pred_region
      _
    $region5: #{tpu_custom_call.1} parent=1 // pred_fallthru
      _
    // Predicated region
    $region6: #{tpu_custom_call.1} parent=1 // pred_check
      _
    $region7: #{tpu_custom_call.1} parent=1 // pred_check_branch
      %19 = sbr.rel (0) target = $region9
    $region8: #{tpu_custom_call.1} parent=1 // pred_region
      _
    $region9: #{tpu_custom_call.1} parent=1 // pred_fallthru
      _
    // Predicated region
    $region10: #{tpu_custom_call.1} parent=1 // pred_check
      _
    $region11: #{tpu_custom_call.1} parent=1 // pred_check_branch
      %21 = sbr.rel (0) target = $region13
    $region12: #{tpu_custom_call.1} parent=1 // pred_region
      _
    $region13: #{tpu_custom_call.1} parent=1 // pred_fallthru
      _
    // Predicated region
    $region14: #{tpu_custom_call.1} parent=1 // pred_check
      _
    $region15: #{tpu_custom_call.1} parent=1 // pred_check_branch
      %23 = sbr.rel (0) target = $region17
    $region16: #{tpu_custom_call.1} parent=1 // pred_region
      _
    $region17: #{tpu_custom_call.1} parent=1 // pred_fallthru
      _
    // Predicated region
    $region18: #{tpu_custom_call.1} parent=1 // pred_check
      _
    $region19: #{tpu_custom_call.1} parent=1 // pred_check_branch
      %25 = sbr.rel (0) target = $region21
    $region20: #{tpu_custom_call.1} parent=1 // pred_region
      _
    $region21: #{tpu_custom_call.1} parent=1 // pred_fallthru
      _
    // Predicated region
    $region22: #{tpu_custom_call.1} parent=1 // pred_check
      _
    $region23: #{tpu_custom_call.1} parent=1 // pred_check_branch
      %27 = sbr.rel (0) target = $region25
    $region24: #{tpu_custom_call.1} parent=1 // pred_region
      _
    $region25: #{tpu_custom_call.1} parent=1 // pred_fallthru
      _
    // Predicated region
    $region26: #{tpu_custom_call.1} parent=1 // pred_check
      _
    $region27: #{tpu_custom_call.1} parent=1 // pred_check_branch
      %29 = sbr.rel (0) target = $region29
    $region28: #{tpu_custom_call.1} parent=1 // pred_region
      _
    $region29: #{tpu_custom_call.1} parent=1 // pred_fallthru
      _
    // Predicated region
    $region30: #{tpu_custom_call.1} parent=1 // pred_check
      _
    $region31: #{tpu_custom_call.1} parent=1 // pred_check_branch
      %31 = sbr.rel (0) target = $region33
    $region32: #{tpu_custom_call.1} parent=1 // pred_region
      _
    $region33: #{tpu_custom_call.1} parent=1 // pred_fallthru
      _
    // Predicated region
    $region34: #{tpu_custom_call.1} parent=1 // pred_check
      _
    $region35: #{tpu_custom_call.1} parent=1 // pred_check_branch
      %33 = sbr.rel (0) target = $region37
    $region36: #{tpu_custom_call.1} parent=1 // pred_region
      _
    $region37: #{tpu_custom_call.1} parent=1 // pred_fallthru
      _
    // Predicated region
    $region38: #{tpu_custom_call.1} parent=1 // pred_check
      _
    $region39: #{tpu_custom_call.1} parent=1 // pred_check_branch
      %35 = sbr.rel (0) target = $region41
    $region40: #{tpu_custom_call.1} parent=1 // pred_region
      _
    $region41: #{tpu_custom_call.1} parent=1 // pred_fallthru
      _
    %v37 = vld [vmem:[%s0] sm:$0xff]
    %v38 = vld [vmem:[%s0 + $0x8] sm:$0xff]
    %v39 = vld [vmem:[%s0 + $0x10] sm:$0xff]
    %v40 = vld [vmem:[%s0 + $0x18] sm:$0xff]
    %v41 = vld [vmem:[%s0 + $0x20] sm:$0xff]
    %v42 = vld [vmem:[%s0 + $0x28] sm:$0xff]
    %v43 = vld [vmem:[%s0 + $0x30] sm:$0xff]
    %v44 = vld [vmem:[%s0 + $0x38] sm:$0xff]
    %v45 = vpack.c.bf16 %v37, %v37
    %v46 = vpack.c.bf16 %v38, %v38
    %v47 = vpack.c.bf16 %v39, %v39
    %v48 = vpack.c.bf16 %v40, %v40
    %v49 = vpack.c.bf16 %v41, %v41
    %v50 = vpack.c.bf16 %v42, %v42
    %v51 = vpack.c.bf16 %v43, %v43
    %v52 = vpack.c.bf16 %v44, %v44
    %v53 = vld [vmem:[%s1] sm:$0xff]
    %v54 = vld [vmem:[%s1 + $0x8] sm:$0xff]
    %v55 = vld [vmem:[%s1 + $0x10] sm:$0xff]
    %v56 = vld [vmem:[%s1 + $0x18] sm:$0xff]
    %v57 = vld [vmem:[%s1 + $0x20] sm:$0xff]
    %v58 = vld [vmem:[%s1 + $0x28] sm:$0xff]
    %v59 = vld [vmem:[%s1 + $0x30] sm:$0xff]
    %v60 = vld [vmem:[%s1 + $0x38] sm:$0xff]
    %v61 = vld [vmem:[%s1 + $0x40] sm:$0xff]
    %v62 = vld [vmem:[%s1 + $0x48] sm:$0xff]
    %v63 = vld [vmem:[%s1 + $0x50] sm:$0xff]
    %v64 = vld [vmem:[%s1 + $0x58] sm:$0xff]
    %v65 = vld [vmem:[%s1 + $0x60] sm:$0xff]
    %v66 = vld [vmem:[%s1 + $0x68] sm:$0xff]
    %v67 = vld [vmem:[%s1 + $0x70] sm:$0xff]
    %v68 = vld [vmem:[%s1 + $0x78] sm:$0xff]
    %v69 = vld [vmem:[%s1 + $0x80] sm:$0xff]
    %v70 = vld [vmem:[%s1 + $0x88] sm:$0xff]
    %v71 = vld [vmem:[%s1 + $0x90] sm:$0xff]
    %v72 = vld [vmem:[%s1 + $0x98] sm:$0xff]
    %v73 = vld [vmem:[%s1 + $0xa0] sm:$0xff]
    %v74 = vld [vmem:[%s1 + $0xa8] sm:$0xff]
    %v75 = vld [vmem:[%s1 + $0xb0] sm:$0xff]
    %v76 = vld [vmem:[%s1 + $0xb8] sm:$0xff]
    %v77 = vld [vmem:[%s1 + $0xc0] sm:$0xff]
    %v78 = vld [vmem:[%s1 + $0xc8] sm:$0xff]
    %v79 = vld [vmem:[%s1 + $0xd0] sm:$0xff]
    %v80 = vld [vmem:[%s1 + $0xd8] sm:$0xff]
    %v81 = vld [vmem:[%s1 + $0xe0] sm:$0xff]
    %v82 = vld [vmem:[%s1 + $0xe8] sm:$0xff]
    %v83 = vld [vmem:[%s1 + $0xf0] sm:$0xff]
    %v84 = vld [vmem:[%s1 + $0xf8] sm:$0xff]
    %v85 = vld [vmem:[%s1 + $0x100] sm:$0xff]
    %v86 = vld [vmem:[%s1 + $0x108] sm:$0xff]
    %v87 = vld [vmem:[%s1 + $0x110] sm:$0xff]
    %v88 = vld [vmem:[%s1 + $0x118] sm:$0xff]
    %v89 = vld [vmem:[%s1 + $0x120] sm:$0xff]
    %v90 = vld [vmem:[%s1 + $0x128] sm:$0xff]
    %v91 = vld [vmem:[%s1 + $0x130] sm:$0xff]
    %v92 = vld [vmem:[%s1 + $0x138] sm:$0xff]
    %v93 = vld [vmem:[%s1 + $0x140] sm:$0xff]
    %v94 = vld [vmem:[%s1 + $0x148] sm:$0xff]
    %v95 = vld [vmem:[%s1 + $0x150] sm:$0xff]
    %v96 = vld [vmem:[%s1 + $0x158] sm:$0xff]
    %v97 = vld [vmem:[%s1 + $0x160] sm:$0xff]
    %v98 = vld [vmem:[%s1 + $0x168] sm:$0xff]
    %v99 = vld [vmem:[%s1 + $0x170] sm:$0xff]
    %v100 = vld [vmem:[%s1 + $0x178] sm:$0xff]
    %v101 = vld [vmem:[%s1 + $0x180] sm:$0xff]
    %v102 = vld [vmem:[%s1 + $0x188] sm:$0xff]
    %v103 = vld [vmem:[%s1 + $0x190] sm:$0xff]
    %v104 = vld [vmem:[%s1 + $0x198] sm:$0xff]
    %v105 = vld [vmem:[%s1 + $0x1a0] sm:$0xff]
    %v106 = vld [vmem:[%s1 + $0x1a8] sm:$0xff]
    %v107 = vld [vmem:[%s1 + $0x1b0] sm:$0xff]
    %v108 = vld [vmem:[%s1 + $0x1b8] sm:$0xff]
    %v109 = vld [vmem:[%s1 + $0x1c0] sm:$0xff]
    %v110 = vld [vmem:[%s1 + $0x1c8] sm:$0xff]
    %v111 = vld [vmem:[%s1 + $0x1d0] sm:$0xff]
    %v112 = vld [vmem:[%s1 + $0x1d8] sm:$0xff]
    %v113 = vld [vmem:[%s1 + $0x1e0] sm:$0xff]
    %v114 = vld [vmem:[%s1 + $0x1e8] sm:$0xff]
    %v115 = vld [vmem:[%s1 + $0x1f0] sm:$0xff]
    %v116 = vld [vmem:[%s1 + $0x1f8] sm:$0xff]
    %v117 = vld [vmem:[%s1 + $0x200] sm:$0xff]
    %v118 = vld [vmem:[%s1 + $0x208] sm:$0xff]
    %v119 = vld [vmem:[%s1 + $0x210] sm:$0xff]
    %v120 = vld [vmem:[%s1 + $0x218] sm:$0xff]
    %v121 = vld [vmem:[%s1 + $0x220] sm:$0xff]
    %v122 = vld [vmem:[%s1 + $0x228] sm:$0xff]
    %v123 = vld [vmem:[%s1 + $0x230] sm:$0xff]
    %v124 = vld [vmem:[%s1 + $0x238] sm:$0xff]
    %v125 = vld [vmem:[%s1 + $0x240] sm:$0xff]
    %v126 = vld [vmem:[%s1 + $0x248] sm:$0xff]
    %v127 = vld [vmem:[%s1 + $0x250] sm:$0xff]
    %v128 = vld [vmem:[%s1 + $0x258] sm:$0xff]
    %v129 = vld [vmem:[%s1 + $0x260] sm:$0xff]
    %v130 = vld [vmem:[%s1 + $0x268] sm:$0xff]
    %v131 = vld [vmem:[%s1 + $0x270] sm:$0xff]
    %v132 = vld [vmem:[%s1 + $0x278] sm:$0xff]
    %v133 = vld [vmem:[%s1 + $0x280] sm:$0xff]
    %v134 = vld [vmem:[%s1 + $0x288] sm:$0xff]
    %v135 = vld [vmem:[%s1 + $0x290] sm:$0xff]
    %v136 = vld [vmem:[%s1 + $0x298] sm:$0xff]
    %v137 = vld [vmem:[%s1 + $0x2a0] sm:$0xff]
    %v138 = vld [vmem:[%s1 + $0x2a8] sm:$0xff]
    %v139 = vld [vmem:[%s1 + $0x2b0] sm:$0xff]
    %v140 = vld [vmem:[%s1 + $0x2b8] sm:$0xff]
    %v141 = vld [vmem:[%s1 + $0x2c0] sm:$0xff]
    %v142 = vld [vmem:[%s1 + $0x2c8] sm:$0xff]
    %v143 = vld [vmem:[%s1 + $0x2d0] sm:$0xff]
    %v144 = vld [vmem:[%s1 + $0x2d8] sm:$0xff]
    %v145 = vld [vmem:[%s1 + $0x2e0] sm:$0xff]
    %v146 = vld [vmem:[%s1 + $0x2e8] sm:$0xff]
    %v147 = vld [vmem:[%s1 + $0x2f0] sm:$0xff]
    %v148 = vld [vmem:[%s1 + $0x2f8] sm:$0xff]
    %v149 = vld [vmem:[%s1 + $0x300] sm:$0xff]
    %v150 = vld [vmem:[%s1 + $0x308] sm:$0xff]
    %v151 = vld [vmem:[%s1 + $0x310] sm:$0xff]
    %v152 = vld [vmem:[%s1 + $0x318] sm:$0xff]
    %v153 = vld [vmem:[%s1 + $0x320] sm:$0xff]
    %v154 = vld [vmem:[%s1 + $0x328] sm:$0xff]
    %v155 = vld [vmem:[%s1 + $0x330] sm:$0xff]
    %v156 = vld [vmem:[%s1 + $0x338] sm:$0xff]
    %v157 = vld [vmem:[%s1 + $0x340] sm:$0xff]
    %v158 = vld [vmem:[%s1 + $0x348] sm:$0xff]
    %v159 = vld [vmem:[%s1 + $0x350] sm:$0xff]
    %v160 = vld [vmem:[%s1 + $0x358] sm:$0xff]
    %v161 = vld [vmem:[%s1 + $0x360] sm:$0xff]
    %v162 = vld [vmem:[%s1 + $0x368] sm:$0xff]
    %v163 = vld [vmem:[%s1 + $0x370] sm:$0xff]
    %v164 = vld [vmem:[%s1 + $0x378] sm:$0xff]
    %v165 = vld [vmem:[%s1 + $0x380] sm:$0xff]
    %v166 = vld [vmem:[%s1 + $0x388] sm:$0xff]
    %v167 = vld [vmem:[%s1 + $0x390] sm:$0xff]
    %v168 = vld [vmem:[%s1 + $0x398] sm:$0xff]
    %v169 = vld [vmem:[%s1 + $0x3a0] sm:$0xff]
    %v170 = vld [vmem:[%s1 + $0x3a8] sm:$0xff]
    %v171 = vld [vmem:[%s1 + $0x3b0] sm:$0xff]
    %v172 = vld [vmem:[%s1 + $0x3b8] sm:$0xff]
    %v173 = vld [vmem:[%s1 + $0x3c0] sm:$0xff]
    %v174 = vld [vmem:[%s1 + $0x3c8] sm:$0xff]
    %v175 = vld [vmem:[%s1 + $0x3d0] sm:$0x55]
    %v176 = vunpack.c.l.s8.bf16 %v53
    %v177 = vunpack.c.h.s8.bf16 %v53
    %v178 = vunpack.c.l.s8.bf16 %v54
    %v179 = vunpack.c.h.s8.bf16 %v54
    %v180 = vunpack.c.l.s8.bf16 %v55
    %v181 = vunpack.c.h.s8.bf16 %v55
    %v182 = vunpack.c.l.s8.bf16 %v56
    %v183 = vunpack.c.h.s8.bf16 %v56
    %v184 = vunpack.c.l.s8.bf16 %v57
    %v185 = vunpack.c.h.s8.bf16 %v57
    %v186 = vunpack.c.l.s8.bf16 %v58
    %v187 = vunpack.c.h.s8.bf16 %v58
    %v188 = vunpack.c.l.s8.bf16 %v59
    %v189 = vunpack.c.h.s8.bf16 %v59
    %v190 = vunpack.c.l.s8.bf16 %v60
    %v191 = vunpack.c.h.s8.bf16 %v60
    %v192 = vunpack.c.l.s8.bf16 %v61
    %v193 = vunpack.c.h.s8.bf16 %v61
    %v194 = vunpack.c.l.s8.bf16 %v62
    %v195 = vunpack.c.h.s8.bf16 %v62
    %v196 = vunpack.c.l.s8.bf16 %v63
    %v197 = vunpack.c.h.s8.bf16 %v63
    %v198 = vunpack.c.l.s8.bf16 %v64
    %v199 = vunpack.c.h.s8.bf16 %v64
    %v200 = vunpack.c.l.s8.bf16 %v65
    %v201 = vunpack.c.h.s8.bf16 %v65
    %v202 = vunpack.c.l.s8.bf16 %v66
    %v203 = vunpack.c.h.s8.bf16 %v66
    %v204 = vunpack.c.l.s8.bf16 %v67
    %v205 = vunpack.c.h.s8.bf16 %v67
    %v206 = vunpack.c.l.s8.bf16 %v68
    %v207 = vunpack.c.h.s8.bf16 %v68
    %v208 = vunpack.c.l.s8.bf16 %v69
    %v209 = vunpack.c.h.s8.bf16 %v69
    %v210 = vunpack.c.l.s8.bf16 %v70
    %v211 = vunpack.c.h.s8.bf16 %v70
    %v212 = vunpack.c.l.s8.bf16 %v71
    %v213 = vunpack.c.h.s8.bf16 %v71
    %v214 = vunpack.c.l.s8.bf16 %v72
    %v215 = vunpack.c.h.s8.bf16 %v72
    %v216 = vunpack.c.l.s8.bf16 %v73
    %v217 = vunpack.c.h.s8.bf16 %v73
    %v218 = vunpack.c.l.s8.bf16 %v74
    %v219 = vunpack.c.h.s8.bf16 %v74
    %v220 = vunpack.c.l.s8.bf16 %v75
    %v221 = vunpack.c.h.s8.bf16 %v75
    %v222 = vunpack.c.l.s8.bf16 %v76
    %v223 = vunpack.c.h.s8.bf16 %v76
    %v224 = vunpack.c.l.s8.bf16 %v77
    %v225 = vunpack.c.h.s8.bf16 %v77
    %v226 = vunpack.c.l.s8.bf16 %v78
    %v227 = vunpack.c.h.s8.bf16 %v78
    %v228 = vunpack.c.l.s8.bf16 %v79
    %v229 = vunpack.c.h.s8.bf16 %v79
    %v230 = vunpack.c.l.s8.bf16 %v80
    %v231 = vunpack.c.h.s8.bf16 %v80
    %v232 = vunpack.c.l.s8.bf16 %v81
    %v233 = vunpack.c.h.s8.bf16 %v81
    %v234 = vunpack.c.l.s8.bf16 %v82
    %v235 = vunpack.c.h.s8.bf16 %v82
    %v236 = vunpack.c.l.s8.bf16 %v83
    %v237 = vunpack.c.h.s8.bf16 %v83
    %v238 = vunpack.c.l.s8.bf16 %v84
    %v239 = vunpack.c.h.s8.bf16 %v84
    %v240 = vunpack.c.l.s8.bf16 %v85
    %v241 = vunpack.c.h.s8.bf16 %v85
    %v242 = vunpack.c.l.s8.bf16 %v86
    %v243 = vunpack.c.h.s8.bf16 %v86
    %v244 = vunpack.c.l.s8.bf16 %v87
    %v245 = vunpack.c.h.s8.bf16 %v87
    %v246 = vunpack.c.l.s8.bf16 %v88
    %v247 = vunpack.c.h.s8.bf16 %v88
    %v248 = vunpack.c.l.s8.bf16 %v89
    %v249 = vunpack.c.h.s8.bf16 %v89
    %v250 = vunpack.c.l.s8.bf16 %v90
    %v251 = vunpack.c.h.s8.bf16 %v90
    %v252 = vunpack.c.l.s8.bf16 %v91
    %v253 = vunpack.c.h.s8.bf16 %v91
    %v254 = vunpack.c.l.s8.bf16 %v92
    %v255 = vunpack.c.h.s8.bf16 %v92
    %v256 = vunpack.c.l.s8.bf16 %v93
    %v257 = vunpack.c.h.s8.bf16 %v93
    %v258 = vunpack.c.l.s8.bf16 %v94
    %v259 = vunpack.c.h.s8.bf16 %v94
    %v260 = vunpack.c.l.s8.bf16 %v95
    %v261 = vunpack.c.h.s8.bf16 %v95
    %v262 = vunpack.c.l.s8.bf16 %v96
    %v263 = vunpack.c.h.s8.bf16 %v96
    %v264 = vunpack.c.l.s8.bf16 %v97
    %v265 = vunpack.c.h.s8.bf16 %v97
    %v266 = vunpack.c.l.s8.bf16 %v98
    %v267 = vunpack.c.h.s8.bf16 %v98
    %v268 = vunpack.c.l.s8.bf16 %v99
    %v269 = vunpack.c.h.s8.bf16 %v99
    %v270 = vunpack.c.l.s8.bf16 %v100
    %v271 = vunpack.c.h.s8.bf16 %v100
    %v272 = vunpack.c.l.s8.bf16 %v101
    %v273 = vunpack.c.h.s8.bf16 %v101
    %v274 = vunpack.c.l.s8.bf16 %v102
    %v275 = vunpack.c.h.s8.bf16 %v102
    %v276 = vunpack.c.l.s8.bf16 %v103
    %v277 = vunpack.c.h.s8.bf16 %v103
    %v278 = vunpack.c.l.s8.bf16 %v104
    %v279 = vunpack.c.h.s8.bf16 %v104
    %v280 = vunpack.c.l.s8.bf16 %v105
    %v281 = vunpack.c.h.s8.bf16 %v105
    %v282 = vunpack.c.l.s8.bf16 %v106
    %v283 = vunpack.c.h.s8.bf16 %v106
    %v284 = vunpack.c.l.s8.bf16 %v107
    %v285 = vunpack.c.h.s8.bf16 %v107
    %v286 = vunpack.c.l.s8.bf16 %v108
    %v287 = vunpack.c.h.s8.bf16 %v108
    %v288 = vunpack.c.l.s8.bf16 %v109
    %v289 = vunpack.c.h.s8.bf16 %v109
    %v290 = vunpack.c.l.s8.bf16 %v110
    %v291 = vunpack.c.h.s8.bf16 %v110
    %v292 = vunpack.c.l.s8.bf16 %v111
    %v293 = vunpack.c.h.s8.bf16 %v111
    %v294 = vunpack.c.l.s8.bf16 %v112
    %v295 = vunpack.c.h.s8.bf16 %v112
    %v296 = vunpack.c.l.s8.bf16 %v113
    %v297 = vunpack.c.h.s8.bf16 %v113
    %v298 = vunpack.c.l.s8.bf16 %v114
    %v299 = vunpack.c.h.s8.bf16 %v114
    %v300 = vunpack.c.l.s8.bf16 %v115
    %v301 = vunpack.c.h.s8.bf16 %v115
    %v302 = vunpack.c.l.s8.bf16 %v116
    %v303 = vunpack.c.h.s8.bf16 %v116
    %v304 = vunpack.c.l.s8.bf16 %v117
    %v305 = vunpack.c.h.s8.bf16 %v117
    %v306 = vunpack.c.l.s8.bf16 %v118
    %v307 = vunpack.c.h.s8.bf16 %v118
    %v308 = vunpack.c.l.s8.bf16 %v119
    %v309 = vunpack.c.h.s8.bf16 %v119
    %v310 = vunpack.c.l.s8.bf16 %v120
    %v311 = vunpack.c.h.s8.bf16 %v120
    %v312 = vunpack.c.l.s8.bf16 %v121
    %v313 = vunpack.c.h.s8.bf16 %v121
    %v314 = vunpack.c.l.s8.bf16 %v122
    %v315 = vunpack.c.h.s8.bf16 %v122
    %v316 = vunpack.c.l.s8.bf16 %v123
    %v317 = vunpack.c.h.s8.bf16 %v123
    %v318 = vunpack.c.l.s8.bf16 %v124
    %v319 = vunpack.c.h.s8.bf16 %v124
    %v320 = vunpack.c.l.s8.bf16 %v125
    %v321 = vunpack.c.h.s8.bf16 %v125
    %v322 = vunpack.c.l.s8.bf16 %v126
    %v323 = vunpack.c.h.s8.bf16 %v126
    %v324 = vunpack.c.l.s8.bf16 %v127
    %v325 = vunpack.c.h.s8.bf16 %v127
    %v326 = vunpack.c.l.s8.bf16 %v128
    %v327 = vunpack.c.h.s8.bf16 %v128
    %v328 = vunpack.c.l.s8.bf16 %v129
    %v329 = vunpack.c.h.s8.bf16 %v129
    %v330 = vunpack.c.l.s8.bf16 %v130
    %v331 = vunpack.c.h.s8.bf16 %v130
    %v332 = vunpack.c.l.s8.bf16 %v131
    %v333 = vunpack.c.h.s8.bf16 %v131
    %v334 = vunpack.c.l.s8.bf16 %v132
    %v335 = vunpack.c.h.s8.bf16 %v132
    %v336 = vunpack.c.l.s8.bf16 %v133
    %v337 = vunpack.c.h.s8.bf16 %v133
    %v338 = vunpack.c.l.s8.bf16 %v134
    %v339 = vunpack.c.h.s8.bf16 %v134
    %v340 = vunpack.c.l.s8.bf16 %v135
    %v341 = vunpack.c.h.s8.bf16 %v135
    %v342 = vunpack.c.l.s8.bf16 %v136
    %v343 = vunpack.c.h.s8.bf16 %v136
    %v344 = vunpack.c.l.s8.bf16 %v137
    %v345 = vunpack.c.h.s8.bf16 %v137
    %v346 = vunpack.c.l.s8.bf16 %v138
    %v347 = vunpack.c.h.s8.bf16 %v138
    %v348 = vunpack.c.l.s8.bf16 %v139
    %v349 = vunpack.c.h.s8.bf16 %v139
    %v350 = vunpack.c.l.s8.bf16 %v140
    %v351 = vunpack.c.h.s8.bf16 %v140
    %v352 = vunpack.c.l.s8.bf16 %v141
    %v353 = vunpack.c.h.s8.bf16 %v141
    %v354 = vunpack.c.l.s8.bf16 %v142
    %v355 = vunpack.c.h.s8.bf16 %v142
    %v356 = vunpack.c.l.s8.bf16 %v143
    %v357 = vunpack.c.h.s8.bf16 %v143
    %v358 = vunpack.c.l.s8.bf16 %v144
    %v359 = vunpack.c.h.s8.bf16 %v144
    %v360 = vunpack.c.l.s8.bf16 %v145
    %v361 = vunpack.c.h.s8.bf16 %v145
    %v362 = vunpack.c.l.s8.bf16 %v146
    %v363 = vunpack.c.h.s8.bf16 %v146
    %v364 = vunpack.c.l.s8.bf16 %v147
    %v365 = vunpack.c.h.s8.bf16 %v147
    %v366 = vunpack.c.l.s8.bf16 %v148
    %v367 = vunpack.c.h.s8.bf16 %v148
    %v368 = vunpack.c.l.s8.bf16 %v149
    %v369 = vunpack.c.h.s8.bf16 %v149
    %v370 = vunpack.c.l.s8.bf16 %v150
    %v371 = vunpack.c.h.s8.bf16 %v150
    %v372 = vunpack.c.l.s8.bf16 %v151
    %v373 = vunpack.c.h.s8.bf16 %v151
    %v374 = vunpack.c.l.s8.bf16 %v152
    %v375 = vunpack.c.h.s8.bf16 %v152
    %v376 = vunpack.c.l.s8.bf16 %v153
    %v377 = vunpack.c.h.s8.bf16 %v153
    %v378 = vunpack.c.l.s8.bf16 %v154
    %v379 = vunpack.c.h.s8.bf16 %v154
    %v380 = vunpack.c.l.s8.bf16 %v155
    %v381 = vunpack.c.h.s8.bf16 %v155
    %v382 = vunpack.c.l.s8.bf16 %v156
    %v383 = vunpack.c.h.s8.bf16 %v156
    %v384 = vunpack.c.l.s8.bf16 %v157
    %v385 = vunpack.c.h.s8.bf16 %v157
    %v386 = vunpack.c.l.s8.bf16 %v158
    %v387 = vunpack.c.h.s8.bf16 %v158
    %v388 = vunpack.c.l.s8.bf16 %v159
    %v389 = vunpack.c.h.s8.bf16 %v159
    %v390 = vunpack.c.l.s8.bf16 %v160
    %v391 = vunpack.c.h.s8.bf16 %v160
    %v392 = vunpack.c.l.s8.bf16 %v161
    %v393 = vunpack.c.h.s8.bf16 %v161
    %v394 = vunpack.c.l.s8.bf16 %v162
    %v395 = vunpack.c.h.s8.bf16 %v162
    %v396 = vunpack.c.l.s8.bf16 %v163
    %v397 = vunpack.c.h.s8.bf16 %v163
    %v398 = vunpack.c.l.s8.bf16 %v164
    %v399 = vunpack.c.h.s8.bf16 %v164
    %v400 = vunpack.c.l.s8.bf16 %v165
    %v401 = vunpack.c.h.s8.bf16 %v165
    %v402 = vunpack.c.l.s8.bf16 %v166
    %v403 = vunpack.c.h.s8.bf16 %v166
    %v404 = vunpack.c.l.s8.bf16 %v167
    %v405 = vunpack.c.h.s8.bf16 %v167
    %v406 = vunpack.c.l.s8.bf16 %v168
    %v407 = vunpack.c.h.s8.bf16 %v168
    %v408 = vunpack.c.l.s8.bf16 %v169
    %v409 = vunpack.c.h.s8.bf16 %v169
    %v410 = vunpack.c.l.s8.bf16 %v170
    %v411 = vunpack.c.h.s8.bf16 %v170
    %v412 = vunpack.c.l.s8.bf16 %v171
    %v413 = vunpack.c.h.s8.bf16 %v171
    %v414 = vunpack.c.l.s8.bf16 %v172
    %v415 = vunpack.c.h.s8.bf16 %v172
    %v416 = vunpack.c.l.s8.bf16 %v173
    %v417 = vunpack.c.h.s8.bf16 %v173
    %v418 = vunpack.c.l.s8.bf16 %v174
    %v419 = vunpack.c.h.s8.bf16 %v174
    %v420 = vunpack.c.l.s8.bf16 %v175
    %v421 = vunpack.c.h.s8.bf16 %v175
    %v668 = vunpack.c.l.b16 %v176
    %v669 = vunpack.c.h.b16 %v176
    %v670 = vunpack.c.l.b16 %v177
    %v671 = vunpack.c.h.b16 %v177
    %v672 = vunpack.c.l.b16 %v178
    %v673 = vunpack.c.h.b16 %v178
    %v674 = vunpack.c.l.b16 %v179
    %v675 = vunpack.c.h.b16 %v179
    %v676 = vunpack.c.l.b16 %v180
    %v677 = vunpack.c.h.b16 %v180
    %v678 = vunpack.c.l.b16 %v181
    %v679 = vunpack.c.h.b16 %v181
    %v680 = vunpack.c.l.b16 %v182
    %v681 = vunpack.c.h.b16 %v182
    %v682 = vunpack.c.l.b16 %v183
    %v683 = vunpack.c.h.b16 %v183
    %v684 = vunpack.c.l.b16 %v184
    %v685 = vunpack.c.h.b16 %v184
    %v686 = vunpack.c.l.b16 %v185
    %v687 = vunpack.c.h.b16 %v185
    %v688 = vunpack.c.l.b16 %v186
    %v689 = vunpack.c.h.b16 %v186
    %v690 = vunpack.c.l.b16 %v187
    %v691 = vunpack.c.h.b16 %v187
    %v692 = vunpack.c.l.b16 %v188
    %v693 = vunpack.c.h.b16 %v188
    %v694 = vunpack.c.l.b16 %v189
    %v695 = vunpack.c.h.b16 %v189
    %v696 = vunpack.c.l.b16 %v190
    %v697 = vunpack.c.h.b16 %v190
    %v698 = vunpack.c.l.b16 %v191
    %v699 = vunpack.c.h.b16 %v191
    %v700 = vunpack.c.l.b16 %v192
    %v701 = vunpack.c.h.b16 %v192
    %v702 = vunpack.c.l.b16 %v193
    %v703 = vunpack.c.h.b16 %v193
    %v704 = vunpack.c.l.b16 %v194
    %v705 = vunpack.c.h.b16 %v194
    %v706 = vunpack.c.l.b16 %v195
    %v707 = vunpack.c.h.b16 %v195
    %v708 = vunpack.c.l.b16 %v196
    %v709 = vunpack.c.h.b16 %v196
    %v710 = vunpack.c.l.b16 %v197
    %v711 = vunpack.c.h.b16 %v197
    %v712 = vunpack.c.l.b16 %v198
    %v713 = vunpack.c.h.b16 %v198
    %v714 = vunpack.c.l.b16 %v199
    %v715 = vunpack.c.h.b16 %v199
    %v716 = vunpack.c.l.b16 %v200
    %v717 = vunpack.c.h.b16 %v200
    %v718 = vunpack.c.l.b16 %v201
    %v719 = vunpack.c.h.b16 %v201
    %v720 = vunpack.c.l.b16 %v202
    %v721 = vunpack.c.h.b16 %v202
    %v722 = vunpack.c.l.b16 %v203
    %v723 = vunpack.c.h.b16 %v203
    %v724 = vunpack.c.l.b16 %v204
    %v725 = vunpack.c.h.b16 %v204
    %v726 = vunpack.c.l.b16 %v205
    %v727 = vunpack.c.h.b16 %v205
    %v728 = vunpack.c.l.b16 %v206
    %v729 = vunpack.c.h.b16 %v206
    %v730 = vunpack.c.l.b16 %v207
    %v731 = vunpack.c.h.b16 %v207
    %v732 = vunpack.c.l.b16 %v208
    %v733 = vunpack.c.h.b16 %v208
    %v734 = vunpack.c.l.b16 %v209
    %v735 = vunpack.c.h.b16 %v209
    %v736 = vunpack.c.l.b16 %v210
    %v737 = vunpack.c.h.b16 %v210
    %v738 = vunpack.c.l.b16 %v211
    %v739 = vunpack.c.h.b16 %v211
    %v740 = vunpack.c.l.b16 %v212
    %v741 = vunpack.c.h.b16 %v212
    %v742 = vunpack.c.l.b16 %v213
    %v743 = vunpack.c.h.b16 %v213
    %v744 = vunpack.c.l.b16 %v214
    %v745 = vunpack.c.h.b16 %v214
    %v746 = vunpack.c.l.b16 %v215
    %v747 = vunpack.c.h.b16 %v215
    %v748 = vunpack.c.l.b16 %v216
    %v749 = vunpack.c.h.b16 %v216
    %v750 = vunpack.c.l.b16 %v217
    %v751 = vunpack.c.h.b16 %v217
    %v752 = vunpack.c.l.b16 %v218
    %v753 = vunpack.c.h.b16 %v218
    %v754 = vunpack.c.l.b16 %v219
    %v755 = vunpack.c.h.b16 %v219
    %v756 = vunpack.c.l.b16 %v220
    %v757 = vunpack.c.h.b16 %v220
    %v758 = vunpack.c.l.b16 %v221
    %v759 = vunpack.c.h.b16 %v221
    %v760 = vunpack.c.l.b16 %v222
    %v761 = vunpack.c.h.b16 %v222
    %v762 = vunpack.c.l.b16 %v223
    %v763 = vunpack.c.h.b16 %v223
    %v764 = vunpack.c.l.b16 %v224
    %v765 = vunpack.c.h.b16 %v224
    %v766 = vunpack.c.l.b16 %v225
    %v767 = vunpack.c.h.b16 %v225
    %v768 = vunpack.c.l.b16 %v226
    %v769 = vunpack.c.h.b16 %v226
    %v770 = vunpack.c.l.b16 %v227
    %v771 = vunpack.c.h.b16 %v227
    %v772 = vunpack.c.l.b16 %v228
    %v773 = vunpack.c.h.b16 %v228
    %v774 = vunpack.c.l.b16 %v229
    %v775 = vunpack.c.h.b16 %v229
    %v776 = vunpack.c.l.b16 %v230
    %v777 = vunpack.c.h.b16 %v230
    %v778 = vunpack.c.l.b16 %v231
    %v779 = vunpack.c.h.b16 %v231
    %v780 = vunpack.c.l.b16 %v232
    %v781 = vunpack.c.h.b16 %v232
    %v782 = vunpack.c.l.b16 %v233
    %v783 = vunpack.c.h.b16 %v233
    %v784 = vunpack.c.l.b16 %v234
    %v785 = vunpack.c.h.b16 %v234
    %v786 = vunpack.c.l.b16 %v235
    %v787 = vunpack.c.h.b16 %v235
    %v788 = vunpack.c.l.b16 %v236
    %v789 = vunpack.c.h.b16 %v236
    %v790 = vunpack.c.l.b16 %v237
    %v791 = vunpack.c.h.b16 %v237
    %v792 = vunpack.c.l.b16 %v238
    %v793 = vunpack.c.h.b16 %v238
    %v794 = vunpack.c.l.b16 %v239
    %v795 = vunpack.c.h.b16 %v239
    %v796 = vunpack.c.l.b16 %v240
    %v797 = vunpack.c.h.b16 %v240
    %v798 = vunpack.c.l.b16 %v241
    %v799 = vunpack.c.h.b16 %v241
    %v800 = vunpack.c.l.b16 %v242
    %v801 = vunpack.c.h.b16 %v242
    %v802 = vunpack.c.l.b16 %v243
    %v803 = vunpack.c.h.b16 %v243
    %v804 = vunpack.c.l.b16 %v244
    %v805 = vunpack.c.h.b16 %v244
    %v806 = vunpack.c.l.b16 %v245
    %v807 = vunpack.c.h.b16 %v245
    %v808 = vunpack.c.l.b16 %v246
    %v809 = vunpack.c.h.b16 %v246
    %v810 = vunpack.c.l.b16 %v247
    %v811 = vunpack.c.h.b16 %v247
    %v812 = vunpack.c.l.b16 %v248
    %v813 = vunpack.c.h.b16 %v248
    %v814 = vunpack.c.l.b16 %v249
    %v815 = vunpack.c.h.b16 %v249
    %v816 = vunpack.c.l.b16 %v250
    %v817 = vunpack.c.h.b16 %v250
    %v818 = vunpack.c.l.b16 %v251
    %v819 = vunpack.c.h.b16 %v251
    %v820 = vunpack.c.l.b16 %v252
    %v821 = vunpack.c.h.b16 %v252
    %v822 = vunpack.c.l.b16 %v253
    %v823 = vunpack.c.h.b16 %v253
    %v824 = vunpack.c.l.b16 %v254
    %v825 = vunpack.c.h.b16 %v254
    %v826 = vunpack.c.l.b16 %v255
    %v827 = vunpack.c.h.b16 %v255
    %v828 = vunpack.c.l.b16 %v256
    %v829 = vunpack.c.h.b16 %v256
    %v830 = vunpack.c.l.b16 %v257
    %v831 = vunpack.c.h.b16 %v257
    %v832 = vunpack.c.l.b16 %v258
    %v833 = vunpack.c.h.b16 %v258
    %v834 = vunpack.c.l.b16 %v259
    %v835 = vunpack.c.h.b16 %v259
    %v836 = vunpack.c.l.b16 %v260
    %v837 = vunpack.c.h.b16 %v260
    %v838 = vunpack.c.l.b16 %v261
    %v839 = vunpack.c.h.b16 %v261
    %v840 = vunpack.c.l.b16 %v262
    %v841 = vunpack.c.h.b16 %v262
    %v842 = vunpack.c.l.b16 %v263
    %v843 = vunpack.c.h.b16 %v263
    %v844 = vunpack.c.l.b16 %v264
    %v845 = vunpack.c.h.b16 %v264
    %v846 = vunpack.c.l.b16 %v265
    %v847 = vunpack.c.h.b16 %v265
    %v848 = vunpack.c.l.b16 %v266
    %v849 = vunpack.c.h.b16 %v266
    %v850 = vunpack.c.l.b16 %v267
    %v851 = vunpack.c.h.b16 %v267
    %v852 = vunpack.c.l.b16 %v268
    %v853 = vunpack.c.h.b16 %v268
    %v854 = vunpack.c.l.b16 %v269
    %v855 = vunpack.c.h.b16 %v269
    %v856 = vunpack.c.l.b16 %v270
    %v857 = vunpack.c.h.b16 %v270
    %v858 = vunpack.c.l.b16 %v271
    %v859 = vunpack.c.h.b16 %v271
    %v860 = vunpack.c.l.b16 %v272
    %v861 = vunpack.c.h.b16 %v272
    %v862 = vunpack.c.l.b16 %v273
    %v863 = vunpack.c.h.b16 %v273
    %v864 = vunpack.c.l.b16 %v274
    %v865 = vunpack.c.h.b16 %v274
    %v866 = vunpack.c.l.b16 %v275
    %v867 = vunpack.c.h.b16 %v275
    %v868 = vunpack.c.l.b16 %v276
    %v869 = vunpack.c.h.b16 %v276
    %v870 = vunpack.c.l.b16 %v277
    %v871 = vunpack.c.h.b16 %v277
    %v872 = vunpack.c.l.b16 %v278
    %v873 = vunpack.c.h.b16 %v278
    %v874 = vunpack.c.l.b16 %v279
    %v875 = vunpack.c.h.b16 %v279
    %v876 = vunpack.c.l.b16 %v280
    %v877 = vunpack.c.h.b16 %v280
    %v878 = vunpack.c.l.b16 %v281
    %v879 = vunpack.c.h.b16 %v281
    %v880 = vunpack.c.l.b16 %v282
    %v881 = vunpack.c.h.b16 %v282
    %v882 = vunpack.c.l.b16 %v283
    %v883 = vunpack.c.h.b16 %v283
    %v884 = vunpack.c.l.b16 %v284
    %v885 = vunpack.c.h.b16 %v284
    %v886 = vunpack.c.l.b16 %v285
    %v887 = vunpack.c.h.b16 %v285
    %v888 = vunpack.c.l.b16 %v286
    %v889 = vunpack.c.h.b16 %v286
    %v890 = vunpack.c.l.b16 %v287
    %v891 = vunpack.c.h.b16 %v287
    %v892 = vunpack.c.l.b16 %v288
    %v893 = vunpack.c.h.b16 %v288
    %v894 = vunpack.c.l.b16 %v289
    %v895 = vunpack.c.h.b16 %v289
    %v896 = vunpack.c.l.b16 %v290
    %v897 = vunpack.c.h.b16 %v290
    %v898 = vunpack.c.l.b16 %v291
    %v899 = vunpack.c.h.b16 %v291
    %v900 = vunpack.c.l.b16 %v292
    %v901 = vunpack.c.h.b16 %v292
    %v902 = vunpack.c.l.b16 %v293
    %v903 = vunpack.c.h.b16 %v293
    %v904 = vunpack.c.l.b16 %v294
    %v905 = vunpack.c.h.b16 %v294
    %v906 = vunpack.c.l.b16 %v295
    %v907 = vunpack.c.h.b16 %v295
    %v908 = vunpack.c.l.b16 %v296
    %v909 = vunpack.c.h.b16 %v296
    %v910 = vunpack.c.l.b16 %v297
    %v911 = vunpack.c.h.b16 %v297
    %v912 = vunpack.c.l.b16 %v298
    %v913 = vunpack.c.h.b16 %v298
    %v914 = vunpack.c.l.b16 %v299
    %v915 = vunpack.c.h.b16 %v299
    %v916 = vunpack.c.l.b16 %v300
    %v917 = vunpack.c.h.b16 %v300
    %v918 = vunpack.c.l.b16 %v301
    %v919 = vunpack.c.h.b16 %v301
    %v920 = vunpack.c.l.b16 %v302
    %v921 = vunpack.c.h.b16 %v302
    %v922 = vunpack.c.l.b16 %v303
    %v923 = vunpack.c.h.b16 %v303
    %v924 = vunpack.c.l.b16 %v304
    %v925 = vunpack.c.h.b16 %v304
    %v926 = vunpack.c.l.b16 %v305
    %v927 = vunpack.c.h.b16 %v305
    %v928 = vunpack.c.l.b16 %v306
    %v929 = vunpack.c.h.b16 %v306
    %v930 = vunpack.c.l.b16 %v307
    %v931 = vunpack.c.h.b16 %v307
    %v932 = vunpack.c.l.b16 %v308
    %v933 = vunpack.c.h.b16 %v308
    %v934 = vunpack.c.l.b16 %v309
    %v935 = vunpack.c.h.b16 %v309
    %v936 = vunpack.c.l.b16 %v310
    %v937 = vunpack.c.h.b16 %v310
    %v938 = vunpack.c.l.b16 %v311
    %v939 = vunpack.c.h.b16 %v311
    %v940 = vunpack.c.l.b16 %v312
    %v941 = vunpack.c.h.b16 %v312
    %v942 = vunpack.c.l.b16 %v313
    %v943 = vunpack.c.h.b16 %v313
    %v944 = vunpack.c.l.b16 %v314
    %v945 = vunpack.c.h.b16 %v314
    %v946 = vunpack.c.l.b16 %v315
    %v947 = vunpack.c.h.b16 %v315
    %v948 = vunpack.c.l.b16 %v316
    %v949 = vunpack.c.h.b16 %v316
    %v950 = vunpack.c.l.b16 %v317
    %v951 = vunpack.c.h.b16 %v317
    %v952 = vunpack.c.l.b16 %v318
    %v953 = vunpack.c.h.b16 %v318
    %v954 = vunpack.c.l.b16 %v319
    %v955 = vunpack.c.h.b16 %v319
    %v956 = vunpack.c.l.b16 %v320
    %v957 = vunpack.c.h.b16 %v320
    %v958 = vunpack.c.l.b16 %v321
    %v959 = vunpack.c.h.b16 %v321
    %v960 = vunpack.c.l.b16 %v322
    %v961 = vunpack.c.h.b16 %v322
    %v962 = vunpack.c.l.b16 %v323
    %v963 = vunpack.c.h.b16 %v323
    %v964 = vunpack.c.l.b16 %v324
    %v965 = vunpack.c.h.b16 %v324
    %v966 = vunpack.c.l.b16 %v325
    %v967 = vunpack.c.h.b16 %v325
    %v968 = vunpack.c.l.b16 %v326
    %v969 = vunpack.c.h.b16 %v326
    %v970 = vunpack.c.l.b16 %v327
    %v971 = vunpack.c.h.b16 %v327
    %v972 = vunpack.c.l.b16 %v328
    %v973 = vunpack.c.h.b16 %v328
    %v974 = vunpack.c.l.b16 %v329
    %v975 = vunpack.c.h.b16 %v329
    %v976 = vunpack.c.l.b16 %v330
    %v977 = vunpack.c.h.b16 %v330
    %v978 = vunpack.c.l.b16 %v331
    %v979 = vunpack.c.h.b16 %v331
    %v980 = vunpack.c.l.b16 %v332
    %v981 = vunpack.c.h.b16 %v332
    %v982 = vunpack.c.l.b16 %v333
    %v983 = vunpack.c.h.b16 %v333
    %v984 = vunpack.c.l.b16 %v334
    %v985 = vunpack.c.h.b16 %v334
    %v986 = vunpack.c.l.b16 %v335
    %v987 = vunpack.c.h.b16 %v335
    %v988 = vunpack.c.l.b16 %v336
    %v989 = vunpack.c.h.b16 %v336
    %v990 = vunpack.c.l.b16 %v337
    %v991 = vunpack.c.h.b16 %v337
    %v992 = vunpack.c.l.b16 %v338
    %v993 = vunpack.c.h.b16 %v338
    %v994 = vunpack.c.l.b16 %v339
    %v995 = vunpack.c.h.b16 %v339
    %v996 = vunpack.c.l.b16 %v340
    %v997 = vunpack.c.h.b16 %v340
    %v998 = vunpack.c.l.b16 %v341
    %v999 = vunpack.c.h.b16 %v341
    %v1000 = vunpack.c.l.b16 %v342
    %v1001 = vunpack.c.h.b16 %v342
    %v1002 = vunpack.c.l.b16 %v343
    %v1003 = vunpack.c.h.b16 %v343
    %v1004 = vunpack.c.l.b16 %v344
    %v1005 = vunpack.c.h.b16 %v344
    %v1006 = vunpack.c.l.b16 %v345
    %v1007 = vunpack.c.h.b16 %v345
    %v1008 = vunpack.c.l.b16 %v346
    %v1009 = vunpack.c.h.b16 %v346
    %v1010 = vunpack.c.l.b16 %v347
    %v1011 = vunpack.c.h.b16 %v347
    %v1012 = vunpack.c.l.b16 %v348
    %v1013 = vunpack.c.h.b16 %v348
    %v1014 = vunpack.c.l.b16 %v349
    %v1015 = vunpack.c.h.b16 %v349
    %v1016 = vunpack.c.l.b16 %v350
    %v1017 = vunpack.c.h.b16 %v350
    %v1018 = vunpack.c.l.b16 %v351
    %v1019 = vunpack.c.h.b16 %v351
    %v1020 = vunpack.c.l.b16 %v352
    %v1021 = vunpack.c.h.b16 %v352
    %v1022 = vunpack.c.l.b16 %v353
    %v1023 = vunpack.c.h.b16 %v353
    %v1024 = vunpack.c.l.b16 %v354
    %v1025 = vunpack.c.h.b16 %v354
    %v1026 = vunpack.c.l.b16 %v355
    %v1027 = vunpack.c.h.b16 %v355
    %v1028 = vunpack.c.l.b16 %v356
    %v1029 = vunpack.c.h.b16 %v356
    %v1030 = vunpack.c.l.b16 %v357
    %v1031 = vunpack.c.h.b16 %v357
    %v1032 = vunpack.c.l.b16 %v358
    %v1033 = vunpack.c.h.b16 %v358
    %v1034 = vunpack.c.l.b16 %v359
    %v1035 = vunpack.c.h.b16 %v359
    %v1036 = vunpack.c.l.b16 %v360
    %v1037 = vunpack.c.h.b16 %v360
    %v1038 = vunpack.c.l.b16 %v361
    %v1039 = vunpack.c.h.b16 %v361
    %v1040 = vunpack.c.l.b16 %v362
    %v1041 = vunpack.c.h.b16 %v362
    %v1042 = vunpack.c.l.b16 %v363
    %v1043 = vunpack.c.h.b16 %v363
    %v1044 = vunpack.c.l.b16 %v364
    %v1045 = vunpack.c.h.b16 %v364
    %v1046 = vunpack.c.l.b16 %v365
    %v1047 = vunpack.c.h.b16 %v365
    %v1048 = vunpack.c.l.b16 %v366
    %v1049 = vunpack.c.h.b16 %v366
    %v1050 = vunpack.c.l.b16 %v367
    %v1051 = vunpack.c.h.b16 %v367
    %v1052 = vunpack.c.l.b16 %v368
    %v1053 = vunpack.c.h.b16 %v368
    %v1054 = vunpack.c.l.b16 %v369
    %v1055 = vunpack.c.h.b16 %v369
    %v1056 = vunpack.c.l.b16 %v370
    %v1057 = vunpack.c.h.b16 %v370
    %v1058 = vunpack.c.l.b16 %v371
    %v1059 = vunpack.c.h.b16 %v371
    %v1060 = vunpack.c.l.b16 %v372
    %v1061 = vunpack.c.h.b16 %v372
    %v1062 = vunpack.c.l.b16 %v373
    %v1063 = vunpack.c.h.b16 %v373
    %v1064 = vunpack.c.l.b16 %v374
    %v1065 = vunpack.c.h.b16 %v374
    %v1066 = vunpack.c.l.b16 %v375
    %v1067 = vunpack.c.h.b16 %v375
    %v1068 = vunpack.c.l.b16 %v376
    %v1069 = vunpack.c.h.b16 %v376
    %v1070 = vunpack.c.l.b16 %v377
    %v1071 = vunpack.c.h.b16 %v377
    %v1072 = vunpack.c.l.b16 %v378
    %v1073 = vunpack.c.h.b16 %v378
    %v1074 = vunpack.c.l.b16 %v379
    %v1075 = vunpack.c.h.b16 %v379
    %v1076 = vunpack.c.l.b16 %v380
    %v1077 = vunpack.c.h.b16 %v380
    %v1078 = vunpack.c.l.b16 %v381
    %v1079 = vunpack.c.h.b16 %v381
    %v1080 = vunpack.c.l.b16 %v382
    %v1081 = vunpack.c.h.b16 %v382
    %v1082 = vunpack.c.l.b16 %v383
    %v1083 = vunpack.c.h.b16 %v383
    %v1084 = vunpack.c.l.b16 %v384
    %v1085 = vunpack.c.h.b16 %v384
    %v1086 = vunpack.c.l.b16 %v385
    %v1087 = vunpack.c.h.b16 %v385
    %v1088 = vunpack.c.l.b16 %v386
    %v1089 = vunpack.c.h.b16 %v386
    %v1090 = vunpack.c.l.b16 %v387
    %v1091 = vunpack.c.h.b16 %v387
    %v1092 = vunpack.c.l.b16 %v388
    %v1093 = vunpack.c.h.b16 %v388
    %v1094 = vunpack.c.l.b16 %v389
    %v1095 = vunpack.c.h.b16 %v389
    %v1096 = vunpack.c.l.b16 %v390
    %v1097 = vunpack.c.h.b16 %v390
    %v1098 = vunpack.c.l.b16 %v391
    %v1099 = vunpack.c.h.b16 %v391
    %v1100 = vunpack.c.l.b16 %v392
    %v1101 = vunpack.c.h.b16 %v392
    %v1102 = vunpack.c.l.b16 %v393
    %v1103 = vunpack.c.h.b16 %v393
    %v1104 = vunpack.c.l.b16 %v394
    %v1105 = vunpack.c.h.b16 %v394
    %v1106 = vunpack.c.l.b16 %v395
    %v1107 = vunpack.c.h.b16 %v395
    %v1108 = vunpack.c.l.b16 %v396
    %v1109 = vunpack.c.h.b16 %v396
    %v1110 = vunpack.c.l.b16 %v397
    %v1111 = vunpack.c.h.b16 %v397
    %v1112 = vunpack.c.l.b16 %v398
    %v1113 = vunpack.c.h.b16 %v398
    %v1114 = vunpack.c.l.b16 %v399
    %v1115 = vunpack.c.h.b16 %v399
    %v1116 = vunpack.c.l.b16 %v400
    %v1117 = vunpack.c.h.b16 %v400
    %v1118 = vunpack.c.l.b16 %v401
    %v1119 = vunpack.c.h.b16 %v401
    %v1120 = vunpack.c.l.b16 %v402
    %v1121 = vunpack.c.h.b16 %v402
    %v1122 = vunpack.c.l.b16 %v403
    %v1123 = vunpack.c.h.b16 %v403
    %v1124 = vunpack.c.l.b16 %v404
    %v1125 = vunpack.c.h.b16 %v404
    %v1126 = vunpack.c.l.b16 %v405
    %v1127 = vunpack.c.h.b16 %v405
    %v1128 = vunpack.c.l.b16 %v406
    %v1129 = vunpack.c.h.b16 %v406
    %v1130 = vunpack.c.l.b16 %v407
    %v1131 = vunpack.c.h.b16 %v407
    %v1132 = vunpack.c.l.b16 %v408
    %v1133 = vunpack.c.h.b16 %v408
    %v1134 = vunpack.c.l.b16 %v409
    %v1135 = vunpack.c.h.b16 %v409
    %v1136 = vunpack.c.l.b16 %v410
    %v1137 = vunpack.c.h.b16 %v410
    %v1138 = vunpack.c.l.b16 %v411
    %v1139 = vunpack.c.h.b16 %v411
    %v1140 = vunpack.c.l.b16 %v412
    %v1141 = vunpack.c.h.b16 %v412
    %v1142 = vunpack.c.l.b16 %v413
    %v1143 = vunpack.c.h.b16 %v413
    %v1144 = vunpack.c.l.b16 %v414
    %v1145 = vunpack.c.h.b16 %v414
    %v1146 = vunpack.c.l.b16 %v415
    %v1147 = vunpack.c.h.b16 %v415
    %v1148 = vunpack.c.l.b16 %v416
    %v1149 = vunpack.c.h.b16 %v416
    %v1150 = vunpack.c.l.b16 %v417
    %v1151 = vunpack.c.h.b16 %v417
    %v1152 = vunpack.c.l.b16 %v418
    %v1153 = vunpack.c.h.b16 %v418
    %v1154 = vunpack.c.l.b16 %v419
    %v1155 = vunpack.c.h.b16 %v419
    %v1156 = vunpack.c.l.b16 %v420
    %v1157 = vunpack.c.h.b16 %v420
    %v1158 = vunpack.c.l.b16 %v421
    %v1159 = vunpack.c.h.b16 %v421
    %v1160 = vpack.c.b16 %v672, %v668
    %v1161 = vpack.c.b16 %v673, %v669
    %v1162 = vpack.c.b16 %v674, %v670
    %v1163 = vpack.c.b16 %v675, %v671
    %v1164 = vpack.c.b16 %v680, %v676
    %v1165 = vpack.c.b16 %v681, %v677
    %v1166 = vpack.c.b16 %v682, %v678
    %v1167 = vpack.c.b16 %v683, %v679
    %v1168 = vpack.c.b16 %v688, %v684
    %v1169 = vpack.c.b16 %v689, %v685
    %v1170 = vpack.c.b16 %v690, %v686
    %v1171 = vpack.c.b16 %v691, %v687
    %v1172 = vpack.c.b16 %v696, %v692
    %v1173 = vpack.c.b16 %v697, %v693
    %v1174 = vpack.c.b16 %v698, %v694
    %v1175 = vpack.c.b16 %v699, %v695
    %v1176 = vpack.c.b16 %v704, %v700
    %v1177 = vpack.c.b16 %v705, %v701
    %v1178 = vpack.c.b16 %v706, %v702
    %v1179 = vpack.c.b16 %v707, %v703
    %v1180 = vpack.c.b16 %v712, %v708
    %v1181 = vpack.c.b16 %v713, %v709
    %v1182 = vpack.c.b16 %v714, %v710
    %v1183 = vpack.c.b16 %v715, %v711
    %v1184 = vpack.c.b16 %v720, %v716
    %v1185 = vpack.c.b16 %v721, %v717
    %v1186 = vpack.c.b16 %v722, %v718
    %v1187 = vpack.c.b16 %v723, %v719
    %v1188 = vpack.c.b16 %v728, %v724
    %v1189 = vpack.c.b16 %v729, %v725
    %v1190 = vpack.c.b16 %v730, %v726
    %v1191 = vpack.c.b16 %v731, %v727
    %v1192 = vpack.c.b16 %v736, %v732
    %v1193 = vpack.c.b16 %v737, %v733
    %v1194 = vpack.c.b16 %v738, %v734
    %v1195 = vpack.c.b16 %v739, %v735
    %v1196 = vpack.c.b16 %v744, %v740
    %v1197 = vpack.c.b16 %v745, %v741
    %v1198 = vpack.c.b16 %v746, %v742
    %v1199 = vpack.c.b16 %v747, %v743
    %v1200 = vpack.c.b16 %v752, %v748
    %v1201 = vpack.c.b16 %v753, %v749
    %v1202 = vpack.c.b16 %v754, %v750
    %v1203 = vpack.c.b16 %v755, %v751
    %v1204 = vpack.c.b16 %v760, %v756
    %v1205 = vpack.c.b16 %v761, %v757
    %v1206 = vpack.c.b16 %v762, %v758
    %v1207 = vpack.c.b16 %v763, %v759
    %v1208 = vpack.c.b16 %v768, %v764
    %v1209 = vpack.c.b16 %v769, %v765
    %v1210 = vpack.c.b16 %v770, %v766
    %v1211 = vpack.c.b16 %v771, %v767
    %v1212 = vpack.c.b16 %v776, %v772
    %v1213 = vpack.c.b16 %v777, %v773
    %v1214 = vpack.c.b16 %v778, %v774
    %v1215 = vpack.c.b16 %v779, %v775
    %v1216 = vpack.c.b16 %v784, %v780
    %v1217 = vpack.c.b16 %v785, %v781
    %v1218 = vpack.c.b16 %v786, %v782
    %v1219 = vpack.c.b16 %v787, %v783
    %v1220 = vpack.c.b16 %v792, %v788
    %v1221 = vpack.c.b16 %v793, %v789
    %v1222 = vpack.c.b16 %v794, %v790
    %v1223 = vpack.c.b16 %v795, %v791
    %v1224 = vpack.c.b16 %v800, %v796
    %v1225 = vpack.c.b16 %v801, %v797
    %v1226 = vpack.c.b16 %v802, %v798
    %v1227 = vpack.c.b16 %v803, %v799
    %v1228 = vpack.c.b16 %v808, %v804
    %v1229 = vpack.c.b16 %v809, %v805
    %v1230 = vpack.c.b16 %v810, %v806
    %v1231 = vpack.c.b16 %v811, %v807
    %v1232 = vpack.c.b16 %v816, %v812
    %v1233 = vpack.c.b16 %v817, %v813
    %v1234 = vpack.c.b16 %v818, %v814
    %v1235 = vpack.c.b16 %v819, %v815
    %v1236 = vpack.c.b16 %v824, %v820
    %v1237 = vpack.c.b16 %v825, %v821
    %v1238 = vpack.c.b16 %v826, %v822
    %v1239 = vpack.c.b16 %v827, %v823
    %v1240 = vpack.c.b16 %v832, %v828
    %v1241 = vpack.c.b16 %v833, %v829
    %v1242 = vpack.c.b16 %v834, %v830
    %v1243 = vpack.c.b16 %v835, %v831
    %v1244 = vpack.c.b16 %v840, %v836
    %v1245 = vpack.c.b16 %v841, %v837
    %v1246 = vpack.c.b16 %v842, %v838
    %v1247 = vpack.c.b16 %v843, %v839
    %v1248 = vpack.c.b16 %v848, %v844
    %v1249 = vpack.c.b16 %v849, %v845
    %v1250 = vpack.c.b16 %v850, %v846
    %v1251 = vpack.c.b16 %v851, %v847
    %v1252 = vpack.c.b16 %v856, %v852
    %v1253 = vpack.c.b16 %v857, %v853
    %v1254 = vpack.c.b16 %v858, %v854
    %v1255 = vpack.c.b16 %v859, %v855
    %v1256 = vpack.c.b16 %v864, %v860
    %v1257 = vpack.c.b16 %v865, %v861
    %v1258 = vpack.c.b16 %v866, %v862
    %v1259 = vpack.c.b16 %v867, %v863
    %v1260 = vpack.c.b16 %v872, %v868
    %v1261 = vpack.c.b16 %v873, %v869
    %v1262 = vpack.c.b16 %v874, %v870
    %v1263 = vpack.c.b16 %v875, %v871
    %v1264 = vpack.c.b16 %v880, %v876
    %v1265 = vpack.c.b16 %v881, %v877
    %v1266 = vpack.c.b16 %v882, %v878
    %v1267 = vpack.c.b16 %v883, %v879
    %v1268 = vpack.c.b16 %v888, %v884
    %v1269 = vpack.c.b16 %v889, %v885
    %v1270 = vpack.c.b16 %v890, %v886
    %v1271 = vpack.c.b16 %v891, %v887
    %v1272 = vpack.c.b16 %v896, %v892
    %v1273 = vpack.c.b16 %v897, %v893
    %v1274 = vpack.c.b16 %v898, %v894
    %v1275 = vpack.c.b16 %v899, %v895
    %v1276 = vpack.c.b16 %v904, %v900
    %v1277 = vpack.c.b16 %v905, %v901
    %v1278 = vpack.c.b16 %v906, %v902
    %v1279 = vpack.c.b16 %v907, %v903
    %v1280 = vpack.c.b16 %v912, %v908
    %v1281 = vpack.c.b16 %v913, %v909
    %v1282 = vpack.c.b16 %v914, %v910
    %v1283 = vpack.c.b16 %v915, %v911
    %v1284 = vpack.c.b16 %v920, %v916
    %v1285 = vpack.c.b16 %v921, %v917
    %v1286 = vpack.c.b16 %v922, %v918
    %v1287 = vpack.c.b16 %v923, %v919
    %v1288 = vpack.c.b16 %v928, %v924
    %v1289 = vpack.c.b16 %v929, %v925
    %v1290 = vpack.c.b16 %v930, %v926
    %v1291 = vpack.c.b16 %v931, %v927
    %v1292 = vpack.c.b16 %v936, %v932
    %v1293 = vpack.c.b16 %v937, %v933
    %v1294 = vpack.c.b16 %v938, %v934
    %v1295 = vpack.c.b16 %v939, %v935
    %v1296 = vpack.c.b16 %v944, %v940
    %v1297 = vpack.c.b16 %v945, %v941
    %v1298 = vpack.c.b16 %v946, %v942
    %v1299 = vpack.c.b16 %v947, %v943
    %v1300 = vpack.c.b16 %v952, %v948
    %v1301 = vpack.c.b16 %v953, %v949
    %v1302 = vpack.c.b16 %v954, %v950
    %v1303 = vpack.c.b16 %v955, %v951
    %v1304 = vpack.c.b16 %v960, %v956
    %v1305 = vpack.c.b16 %v961, %v957
    %v1306 = vpack.c.b16 %v962, %v958
    %v1307 = vpack.c.b16 %v963, %v959
    %v1308 = vpack.c.b16 %v968, %v964
    %v1309 = vpack.c.b16 %v969, %v965
    %v1310 = vpack.c.b16 %v970, %v966
    %v1311 = vpack.c.b16 %v971, %v967
    %v1312 = vpack.c.b16 %v976, %v972
    %v1313 = vpack.c.b16 %v977, %v973
    %v1314 = vpack.c.b16 %v978, %v974
    %v1315 = vpack.c.b16 %v979, %v975
    %v1316 = vpack.c.b16 %v984, %v980
    %v1317 = vpack.c.b16 %v985, %v981
    %v1318 = vpack.c.b16 %v986, %v982
    %v1319 = vpack.c.b16 %v987, %v983
    %v1320 = vpack.c.b16 %v992, %v988
    %v1321 = vpack.c.b16 %v993, %v989
    %v1322 = vpack.c.b16 %v994, %v990
    %v1323 = vpack.c.b16 %v995, %v991
    %v1324 = vpack.c.b16 %v1000, %v996
    %v1325 = vpack.c.b16 %v1001, %v997
    %v1326 = vpack.c.b16 %v1002, %v998
    %v1327 = vpack.c.b16 %v1003, %v999
    %v1328 = vpack.c.b16 %v1008, %v1004
    %v1329 = vpack.c.b16 %v1009, %v1005
    %v1330 = vpack.c.b16 %v1010, %v1006
    %v1331 = vpack.c.b16 %v1011, %v1007
    %v1332 = vpack.c.b16 %v1016, %v1012
    %v1333 = vpack.c.b16 %v1017, %v1013
    %v1334 = vpack.c.b16 %v1018, %v1014
    %v1335 = vpack.c.b16 %v1019, %v1015
    %v1336 = vpack.c.b16 %v1024, %v1020
    %v1337 = vpack.c.b16 %v1025, %v1021
    %v1338 = vpack.c.b16 %v1026, %v1022
    %v1339 = vpack.c.b16 %v1027, %v1023
    %v1340 = vpack.c.b16 %v1032, %v1028
    %v1341 = vpack.c.b16 %v1033, %v1029
    %v1342 = vpack.c.b16 %v1034, %v1030
    %v1343 = vpack.c.b16 %v1035, %v1031
    %v1344 = vpack.c.b16 %v1040, %v1036
    %v1345 = vpack.c.b16 %v1041, %v1037
    %v1346 = vpack.c.b16 %v1042, %v1038
    %v1347 = vpack.c.b16 %v1043, %v1039
    %v1348 = vpack.c.b16 %v1048, %v1044
    %v1349 = vpack.c.b16 %v1049, %v1045
    %v1350 = vpack.c.b16 %v1050, %v1046
    %v1351 = vpack.c.b16 %v1051, %v1047
    %v1352 = vpack.c.b16 %v1056, %v1052
    %v1353 = vpack.c.b16 %v1057, %v1053
    %v1354 = vpack.c.b16 %v1058, %v1054
    %v1355 = vpack.c.b16 %v1059, %v1055
    %v1356 = vpack.c.b16 %v1064, %v1060
    %v1357 = vpack.c.b16 %v1065, %v1061
    %v1358 = vpack.c.b16 %v1066, %v1062
    %v1359 = vpack.c.b16 %v1067, %v1063
    %v1360 = vpack.c.b16 %v1072, %v1068
    %v1361 = vpack.c.b16 %v1073, %v1069
    %v1362 = vpack.c.b16 %v1074, %v1070
    %v1363 = vpack.c.b16 %v1075, %v1071
    %v1364 = vpack.c.b16 %v1080, %v1076
    %v1365 = vpack.c.b16 %v1081, %v1077
    %v1366 = vpack.c.b16 %v1082, %v1078
    %v1367 = vpack.c.b16 %v1083, %v1079
    %v1368 = vpack.c.b16 %v1088, %v1084
    %v1369 = vpack.c.b16 %v1089, %v1085
    %v1370 = vpack.c.b16 %v1090, %v1086
    %v1371 = vpack.c.b16 %v1091, %v1087
    %v1372 = vpack.c.b16 %v1096, %v1092
    %v1373 = vpack.c.b16 %v1097, %v1093
    %v1374 = vpack.c.b16 %v1098, %v1094
    %v1375 = vpack.c.b16 %v1099, %v1095
    %v1376 = vpack.c.b16 %v1104, %v1100
    %v1377 = vpack.c.b16 %v1105, %v1101
    %v1378 = vpack.c.b16 %v1106, %v1102
    %v1379 = vpack.c.b16 %v1107, %v1103
    %v1380 = vpack.c.b16 %v1112, %v1108
    %v1381 = vpack.c.b16 %v1113, %v1109
    %v1382 = vpack.c.b16 %v1114, %v1110
    %v1383 = vpack.c.b16 %v1115, %v1111
    %v1384 = vpack.c.b16 %v1120, %v1116
    %v1385 = vpack.c.b16 %v1121, %v1117
    %v1386 = vpack.c.b16 %v1122, %v1118
    %v1387 = vpack.c.b16 %v1123, %v1119
    %v1388 = vpack.c.b16 %v1128, %v1124
    %v1389 = vpack.c.b16 %v1129, %v1125
    %v1390 = vpack.c.b16 %v1130, %v1126
    %v1391 = vpack.c.b16 %v1131, %v1127
    %v1392 = vpack.c.b16 %v1136, %v1132
    %v1393 = vpack.c.b16 %v1137, %v1133
    %v1394 = vpack.c.b16 %v1138, %v1134
    %v1395 = vpack.c.b16 %v1139, %v1135
    %v1396 = vpack.c.b16 %v1144, %v1140
    %v1397 = vpack.c.b16 %v1145, %v1141
    %v1398 = vpack.c.b16 %v1146, %v1142
    %v1399 = vpack.c.b16 %v1147, %v1143
    %v1400 = vpack.c.b16 %v1152, %v1148
    %v1401 = vpack.c.b16 %v1153, %v1149
    %v1402 = vpack.c.b16 %v1154, %v1150
    %v1403 = vpack.c.b16 %v1155, %v1151
    %v1404 = vpack.c.b16 %v1156, %v1156
    %v1405 = vpack.c.b16 %v1157, %v1157
    %v1406 = vpack.c.b16 %v1158, %v1158
    %v1407 = vpack.c.b16 %v1159, %v1159
    %vm1652 = vcmask 687104
    %v1654 = vsel %vm1652, %v52, 0
    %vm1656 = vcmask 1041408
    %v1658 = vsel %vm1656, %v1404, 0
    %v1661 = vsel %vm1656, %v1405, 0
    %v1664 = vsel %vm1656, %v1406, 0
    %v1667 = vsel %vm1656, %v1407, 0
    %1669 = vmatprep.subr.bf16.mxu0 %v1161
    %1670 = vmatpush1.bf16.msra.mxu0 %v1160
    %1671 = vmatprep.subr.bf16.mxu0 %v1165
    %1672 = vmatpush1.bf16.msra.mxu0 %v1164
    %1673 = vmatprep.subr.bf16.mxu0 %v1169
    %1674 = vmatpush1.bf16.msra.mxu0 %v1168
    %1675 = vmatprep.subr.bf16.mxu0 %v1173
    %1676 = vmatpush1.bf16.msra.mxu0 %v1172
    %1677 = vmatprep.subr.bf16.mxu0 %v1177
    %1678 = vmatpush1.bf16.msra.mxu0 %v1176
    %1679 = vmatprep.subr.bf16.mxu0 %v1181
    %1680 = vmatpush1.bf16.msra.mxu0 %v1180
    %1681 = vmatprep.subr.bf16.mxu0 %v1185
    %1682 = vmatpush1.bf16.msra.mxu0 %v1184
    %1683 = vmatprep.subr.bf16.mxu0 %v1189
    %1684 = vmatpush1.bf16.msra.mxu0 %v1188
    %1685 = vmatprep.subr.bf16.mxu0 %v1193
    %1686 = vmatpush1.bf16.msra.mxu0 %v1192
    %1687 = vmatprep.subr.bf16.mxu0 %v1197
    %1688 = vmatpush1.bf16.msra.mxu0 %v1196
    %1689 = vmatprep.subr.bf16.mxu0 %v1201
    %1690 = vmatpush1.bf16.msra.mxu0 %v1200
    %1691 = vmatprep.subr.bf16.mxu0 %v1205
    %1692 = vmatpush1.bf16.msra.mxu0 %v1204
    %1693 = vmatprep.subr.bf16.mxu0 %v1209
    %1694 = vmatpush1.bf16.msra.mxu0 %v1208
    %1695 = vmatprep.subr.bf16.mxu0 %v1213
    %1696 = vmatpush1.bf16.msra.mxu0 %v1212
    %1697 = vmatprep.subr.bf16.mxu0 %v1217
    %1698 = vmatpush1.bf16.msra.mxu0 %v1216
    %1699 = vmatprep.subr.bf16.mxu0 %v1221
    %1700 = vmatpush1.bf16.msra.mxu0 %v1220
    %1701 = vmatprep.mubr.bf16.mxu0 %v46
    %1702 = vmatmul.mubr.bf16.gmra.mrb[0].mxu0 %v45
    %v1703 = vpop.f32.mrb[0].mxu0
    %v1704 = vadd.f32 0.0, %v1703
    %v1705 = vpop.f32.mrb[0].mxu0
    %v1706 = vadd.f32 0.0, %v1705
    %v1707 = vpop.f32.mrb[0].mxu0
    %v1708 = vpop.f32.mrb[0].mxu0
    %1709 = vdwg.mxu0
    %1710 = vmatprep.subr.bf16.mxu0 %v1225
    %1711 = vmatpush1.bf16.msra.mxu0 %v1224
    %1712 = vmatprep.subr.bf16.mxu0 %v1229
    %1713 = vmatpush1.bf16.msra.mxu0 %v1228
    %1714 = vmatprep.subr.bf16.mxu0 %v1233
    %1715 = vmatpush1.bf16.msra.mxu0 %v1232
    %1716 = vmatprep.subr.bf16.mxu0 %v1237
    %1717 = vmatpush1.bf16.msra.mxu0 %v1236
    %1718 = vmatprep.subr.bf16.mxu0 %v1241
    %1719 = vmatpush1.bf16.msra.mxu0 %v1240
    %1720 = vmatprep.subr.bf16.mxu0 %v1245
    %1721 = vmatpush1.bf16.msra.mxu0 %v1244
    %1722 = vmatprep.subr.bf16.mxu0 %v1249
    %1723 = vmatpush1.bf16.msra.mxu0 %v1248
    %1724 = vmatprep.subr.bf16.mxu0 %v1253
    %1725 = vmatpush1.bf16.msra.mxu0 %v1252
    %1726 = vmatprep.subr.bf16.mxu0 %v1257
    %1727 = vmatpush1.bf16.msra.mxu0 %v1256
    %1728 = vmatprep.subr.bf16.mxu0 %v1261
    %1729 = vmatpush1.bf16.msra.mxu0 %v1260
    %1730 = vmatprep.subr.bf16.mxu0 %v1265
    %1731 = vmatpush1.bf16.msra.mxu0 %v1264
    %1732 = vmatprep.subr.bf16.mxu0 %v1269
    %1733 = vmatpush1.bf16.msra.mxu0 %v1268
    %1734 = vmatprep.subr.bf16.mxu0 %v1273
    %1735 = vmatpush1.bf16.msra.mxu0 %v1272
    %1736 = vmatprep.subr.bf16.mxu0 %v1277
    %1737 = vmatpush1.bf16.msra.mxu0 %v1276
    %1738 = vmatprep.subr.bf16.mxu0 %v1281
    %1739 = vmatpush1.bf16.msra.mxu0 %v1280
    %1740 = vmatprep.subr.bf16.mxu0 %v1285
    %1741 = vmatpush1.bf16.msra.mxu0 %v1284
    %1742 = vmatprep.mubr.bf16.mxu0 %v48
    %1743 = vmatmul.mubr.bf16.gmra.mrb[0].mxu0 %v47
    %v1744 = vpop.f32.mrb[0].mxu0
    %v1745 = vadd.f32 %v1704, %v1744
    %v1746 = vpop.f32.mrb[0].mxu0
    %v1747 = vadd.f32 %v1706, %v1746
    %v1748 = vpop.f32.mrb[0].mxu0
    %v1749 = vpop.f32.mrb[0].mxu0
    %1750 = vdwg.mxu0
    %1751 = vmatprep.subr.bf16.mxu0 %v1289
    %1752 = vmatpush1.bf16.msra.mxu0 %v1288
    %1753 = vmatprep.subr.bf16.mxu0 %v1293
    %1754 = vmatpush1.bf16.msra.mxu0 %v1292
    %1755 = vmatprep.subr.bf16.mxu0 %v1297
    %1756 = vmatpush1.bf16.msra.mxu0 %v1296
    %1757 = vmatprep.subr.bf16.mxu0 %v1301
    %1758 = vmatpush1.bf16.msra.mxu0 %v1300
    %1759 = vmatprep.subr.bf16.mxu0 %v1305
    %1760 = vmatpush1.bf16.msra.mxu0 %v1304
    %1761 = vmatprep.subr.bf16.mxu0 %v1309
    %1762 = vmatpush1.bf16.msra.mxu0 %v1308
    %1763 = vmatprep.subr.bf16.mxu0 %v1313
    %1764 = vmatpush1.bf16.msra.mxu0 %v1312
    %1765 = vmatprep.subr.bf16.mxu0 %v1317
    %1766 = vmatpush1.bf16.msra.mxu0 %v1316
    %1767 = vmatprep.subr.bf16.mxu0 %v1321
    %1768 = vmatpush1.bf16.msra.mxu0 %v1320
    %1769 = vmatprep.subr.bf16.mxu0 %v1325
    %1770 = vmatpush1.bf16.msra.mxu0 %v1324
    %1771 = vmatprep.subr.bf16.mxu0 %v1329
    %1772 = vmatpush1.bf16.msra.mxu0 %v1328
    %1773 = vmatprep.subr.bf16.mxu0 %v1333
    %1774 = vmatpush1.bf16.msra.mxu0 %v1332
    %1775 = vmatprep.subr.bf16.mxu0 %v1337
    %1776 = vmatpush1.bf16.msra.mxu0 %v1336
    %1777 = vmatprep.subr.bf16.mxu0 %v1341
    %1778 = vmatpush1.bf16.msra.mxu0 %v1340
    %1779 = vmatprep.subr.bf16.mxu0 %v1345
    %1780 = vmatpush1.bf16.msra.mxu0 %v1344
    %1781 = vmatprep.subr.bf16.mxu0 %v1349
    %1782 = vmatpush1.bf16.msra.mxu0 %v1348
    %1783 = vmatprep.mubr.bf16.mxu0 %v50
    %1784 = vmatmul.mubr.bf16.gmra.mrb[0].mxu0 %v49
    %v1785 = vpop.f32.mrb[0].mxu0
    %v1786 = vadd.f32 %v1745, %v1785
    %v1787 = vpop.f32.mrb[0].mxu0
    %v1788 = vadd.f32 %v1747, %v1787
    %v1789 = vpop.f32.mrb[0].mxu0
    %v1790 = vpop.f32.mrb[0].mxu0
    %1791 = vdwg.mxu0
    %1792 = vmatprep.subr.bf16.mxu0 %v1353
    %1793 = vmatpush1.bf16.msra.mxu0 %v1352
    %1794 = vmatprep.subr.bf16.mxu0 %v1357
    %1795 = vmatpush1.bf16.msra.mxu0 %v1356
    %1796 = vmatprep.subr.bf16.mxu0 %v1361
    %1797 = vmatpush1.bf16.msra.mxu0 %v1360
    %1798 = vmatprep.subr.bf16.mxu0 %v1365
    %1799 = vmatpush1.bf16.msra.mxu0 %v1364
    %1800 = vmatprep.subr.bf16.mxu0 %v1369
    %1801 = vmatpush1.bf16.msra.mxu0 %v1368
    %1802 = vmatprep.subr.bf16.mxu0 %v1373
    %1803 = vmatpush1.bf16.msra.mxu0 %v1372
    %1804 = vmatprep.subr.bf16.mxu0 %v1377
    %1805 = vmatpush1.bf16.msra.mxu0 %v1376
    %1806 = vmatprep.subr.bf16.mxu0 %v1381
    %1807 = vmatpush1.bf16.msra.mxu0 %v1380
    %1808 = vmatprep.subr.bf16.mxu0 %v1385
    %1809 = vmatpush1.bf16.msra.mxu0 %v1384
    %1810 = vmatprep.subr.bf16.mxu0 %v1389
    %1811 = vmatpush1.bf16.msra.mxu0 %v1388
    %1812 = vmatprep.subr.bf16.mxu0 %v1393
    %1813 = vmatpush1.bf16.msra.mxu0 %v1392
    %1814 = vmatprep.subr.bf16.mxu0 %v1397
    %1815 = vmatpush1.bf16.msra.mxu0 %v1396
    %1816 = vmatprep.subr.bf16.mxu0 %v1401
    %1817 = vmatpush1.bf16.msra.mxu0 %v1400
    %1818 = vmatprep.subr.bf16.mxu0 %v1661
    %1819 = vmatpush1.bf16.msra.mxu0 %v1658
    %1820 = vmatprep.subr.bf16.mxu0 0
    %1821 = vmatpush1.bf16.msra.mxu0 0
    %1822 = vmatprep.subr.bf16.mxu0 0
    %1823 = vmatpush1.bf16.msra.mxu0 0
    %1824 = vmatprep.mubr.bf16.mxu0 %v1654
    %1825 = vmatmul.mubr.bf16.gmra.mrb[0].mxu0 %v51
    %v1826 = vpop.f32.mrb[0].mxu0
    %v1827 = vadd.f32 %v1786, %v1826
    %v1828 = vpop.f32.mrb[0].mxu0
    %v1829 = vadd.f32 %v1788, %v1828
    %v1830 = vpop.f32.mrb[0].mxu0
    %v1831 = vpop.f32.mrb[0].mxu0
    %1832 = vdwg.mxu0
    %1833 = vmatprep.subr.bf16.mxu0 %v1163
    %1834 = vmatpush1.bf16.msra.mxu0 %v1162
    %1835 = vmatprep.subr.bf16.mxu0 %v1167
    %1836 = vmatpush1.bf16.msra.mxu0 %v1166
    %1837 = vmatprep.subr.bf16.mxu0 %v1171
    %1838 = vmatpush1.bf16.msra.mxu0 %v1170
    %1839 = vmatprep.subr.bf16.mxu0 %v1175
    %1840 = vmatpush1.bf16.msra.mxu0 %v1174
    %1841 = vmatprep.subr.bf16.mxu0 %v1179
    %1842 = vmatpush1.bf16.msra.mxu0 %v1178
    %1843 = vmatprep.subr.bf16.mxu0 %v1183
    %1844 = vmatpush1.bf16.msra.mxu0 %v1182
    %1845 = vmatprep.subr.bf16.mxu0 %v1187
    %1846 = vmatpush1.bf16.msra.mxu0 %v1186
    %1847 = vmatprep.subr.bf16.mxu0 %v1191
    %1848 = vmatpush1.bf16.msra.mxu0 %v1190
    %1849 = vmatprep.subr.bf16.mxu0 %v1195
    %1850 = vmatpush1.bf16.msra.mxu0 %v1194
    %1851 = vmatprep.subr.bf16.mxu0 %v1199
    %1852 = vmatpush1.bf16.msra.mxu0 %v1198
    %1853 = vmatprep.subr.bf16.mxu0 %v1203
    %1854 = vmatpush1.bf16.msra.mxu0 %v1202
    %1855 = vmatprep.subr.bf16.mxu0 %v1207
    %1856 = vmatpush1.bf16.msra.mxu0 %v1206
    %1857 = vmatprep.subr.bf16.mxu0 %v1211
    %1858 = vmatpush1.bf16.msra.mxu0 %v1210
    %1859 = vmatprep.subr.bf16.mxu0 %v1215
    %1860 = vmatpush1.bf16.msra.mxu0 %v1214
    %1861 = vmatprep.subr.bf16.mxu0 %v1219
    %1862 = vmatpush1.bf16.msra.mxu0 %v1218
    %1863 = vmatprep.subr.bf16.mxu0 %v1223
    %1864 = vmatpush1.bf16.msra.mxu0 %v1222
    %1865 = vmatprep.mubr.bf16.mxu0 %v46
    %1866 = vmatmul.mubr.bf16.gmra.mrb[0].mxu0 %v45
    %v1867 = vpop.f32.mrb[0].mxu0
    %v1868 = vadd.f32 0.0, %v1867
    %v1869 = vpop.f32.mrb[0].mxu0
    %v1870 = vadd.f32 0.0, %v1869
    %v1871 = vpop.f32.mrb[0].mxu0
    %v1872 = vpop.f32.mrb[0].mxu0
    %1873 = vdwg.mxu0
    %1874 = vmatprep.subr.bf16.mxu0 %v1227
    %1875 = vmatpush1.bf16.msra.mxu0 %v1226
    %1876 = vmatprep.subr.bf16.mxu0 %v1231
    %1877 = vmatpush1.bf16.msra.mxu0 %v1230
    %1878 = vmatprep.subr.bf16.mxu0 %v1235
    %1879 = vmatpush1.bf16.msra.mxu0 %v1234
    %1880 = vmatprep.subr.bf16.mxu0 %v1239
    %1881 = vmatpush1.bf16.msra.mxu0 %v1238
    %1882 = vmatprep.subr.bf16.mxu0 %v1243
    %1883 = vmatpush1.bf16.msra.mxu0 %v1242
    %1884 = vmatprep.subr.bf16.mxu0 %v1247
    %1885 = vmatpush1.bf16.msra.mxu0 %v1246
    %1886 = vmatprep.subr.bf16.mxu0 %v1251
    %1887 = vmatpush1.bf16.msra.mxu0 %v1250
    %1888 = vmatprep.subr.bf16.mxu0 %v1255
    %1889 = vmatpush1.bf16.msra.mxu0 %v1254
    %1890 = vmatprep.subr.bf16.mxu0 %v1259
    %1891 = vmatpush1.bf16.msra.mxu0 %v1258
    %1892 = vmatprep.subr.bf16.mxu0 %v1263
    %1893 = vmatpush1.bf16.msra.mxu0 %v1262
    %1894 = vmatprep.subr.bf16.mxu0 %v1267
    %1895 = vmatpush1.bf16.msra.mxu0 %v1266
    %1896 = vmatprep.subr.bf16.mxu0 %v1271
    %1897 = vmatpush1.bf16.msra.mxu0 %v1270
    %1898 = vmatprep.subr.bf16.mxu0 %v1275
    %1899 = vmatpush1.bf16.msra.mxu0 %v1274
    %1900 = vmatprep.subr.bf16.mxu0 %v1279
    %1901 = vmatpush1.bf16.msra.mxu0 %v1278
    %1902 = vmatprep.subr.bf16.mxu0 %v1283
    %1903 = vmatpush1.bf16.msra.mxu0 %v1282
    %1904 = vmatprep.subr.bf16.mxu0 %v1287
    %1905 = vmatpush1.bf16.msra.mxu0 %v1286
    %1906 = vmatprep.mubr.bf16.mxu0 %v48
    %1907 = vmatmul.mubr.bf16.gmra.mrb[0].mxu0 %v47
    %v1908 = vpop.f32.mrb[0].mxu0
    %v1909 = vadd.f32 %v1868, %v1908
    %v1910 = vpop.f32.mrb[0].mxu0
    %v1911 = vadd.f32 %v1870, %v1910
    %v1912 = vpop.f32.mrb[0].mxu0
    %v1913 = vpop.f32.mrb[0].mxu0
    %1914 = vdwg.mxu0
    %1915 = vmatprep.subr.bf16.mxu0 %v1291
    %1916 = vmatpush1.bf16.msra.mxu0 %v1290
    %1917 = vmatprep.subr.bf16.mxu0 %v1295
    %1918 = vmatpush1.bf16.msra.mxu0 %v1294
    %1919 = vmatprep.subr.bf16.mxu0 %v1299
    %1920 = vmatpush1.bf16.msra.mxu0 %v1298
    %1921 = vmatprep.subr.bf16.mxu0 %v1303
    %1922 = vmatpush1.bf16.msra.mxu0 %v1302
    %1923 = vmatprep.subr.bf16.mxu0 %v1307
    %1924 = vmatpush1.bf16.msra.mxu0 %v1306
    %1925 = vmatprep.subr.bf16.mxu0 %v1311
    %1926 = vmatpush1.bf16.msra.mxu0 %v1310
    %1927 = vmatprep.subr.bf16.mxu0 %v1315
    %1928 = vmatpush1.bf16.msra.mxu0 %v1314
    %1929 = vmatprep.subr.bf16.mxu0 %v1319
    %1930 = vmatpush1.bf16.msra.mxu0 %v1318
    %1931 = vmatprep.subr.bf16.mxu0 %v1323
    %1932 = vmatpush1.bf16.msra.mxu0 %v1322
    %1933 = vmatprep.subr.bf16.mxu0 %v1327
    %1934 = vmatpush1.bf16.msra.mxu0 %v1326
    %1935 = vmatprep.subr.bf16.mxu0 %v1331
    %1936 = vmatpush1.bf16.msra.mxu0 %v1330
    %1937 = vmatprep.subr.bf16.mxu0 %v1335
    %1938 = vmatpush1.bf16.msra.mxu0 %v1334
    %1939 = vmatprep.subr.bf16.mxu0 %v1339
    %1940 = vmatpush1.bf16.msra.mxu0 %v1338
    %1941 = vmatprep.subr.bf16.mxu0 %v1343
    %1942 = vmatpush1.bf16.msra.mxu0 %v1342
    %1943 = vmatprep.subr.bf16.mxu0 %v1347
    %1944 = vmatpush1.bf16.msra.mxu0 %v1346
    %1945 = vmatprep.subr.bf16.mxu0 %v1351
    %1946 = vmatpush1.bf16.msra.mxu0 %v1350
    %1947 = vmatprep.mubr.bf16.mxu0 %v50
    %1948 = vmatmul.mubr.bf16.gmra.mrb[0].mxu0 %v49
    %v1949 = vpop.f32.mrb[0].mxu0
    %v1950 = vadd.f32 %v1909, %v1949
    %v1951 = vpop.f32.mrb[0].mxu0
    %v1952 = vadd.f32 %v1911, %v1951
    %v1953 = vpop.f32.mrb[0].mxu0
    %v1954 = vpop.f32.mrb[0].mxu0
    %1955 = vdwg.mxu0
    %1956 = vmatprep.subr.bf16.mxu0 %v1355
    %1957 = vmatpush1.bf16.msra.mxu0 %v1354
    %1958 = vmatprep.subr.bf16.mxu0 %v1359
    %1959 = vmatpush1.bf16.msra.mxu0 %v1358
    %1960 = vmatprep.subr.bf16.mxu0 %v1363
    %1961 = vmatpush1.bf16.msra.mxu0 %v1362
    %1962 = vmatprep.subr.bf16.mxu0 %v1367
    %1963 = vmatpush1.bf16.msra.mxu0 %v1366
    %1964 = vmatprep.subr.bf16.mxu0 %v1371
    %1965 = vmatpush1.bf16.msra.mxu0 %v1370
    %1966 = vmatprep.subr.bf16.mxu0 %v1375
    %1967 = vmatpush1.bf16.msra.mxu0 %v1374
    %1968 = vmatprep.subr.bf16.mxu0 %v1379
    %1969 = vmatpush1.bf16.msra.mxu0 %v1378
    %1970 = vmatprep.subr.bf16.mxu0 %v1383
    %1971 = vmatpush1.bf16.msra.mxu0 %v1382
    %1972 = vmatprep.subr.bf16.mxu0 %v1387
    %1973 = vmatpush1.bf16.msra.mxu0 %v1386
    %1974 = vmatprep.subr.bf16.mxu0 %v1391
    %1975 = vmatpush1.bf16.msra.mxu0 %v1390
    %1976 = vmatprep.subr.bf16.mxu0 %v1395
    %1977 = vmatpush1.bf16.msra.mxu0 %v1394
    %1978 = vmatprep.subr.bf16.mxu0 %v1399
    %1979 = vmatpush1.bf16.msra.mxu0 %v1398
    %1980 = vmatprep.subr.bf16.mxu0 %v1403
    %1981 = vmatpush1.bf16.msra.mxu0 %v1402
    %1982 = vmatprep.subr.bf16.mxu0 %v1667
    %1983 = vmatpush1.bf16.msra.mxu0 %v1664
    %1984 = vmatprep.subr.bf16.mxu0 0
    %1985 = vmatpush1.bf16.msra.mxu0 0
    %1986 = vmatprep.subr.bf16.mxu0 0
    %1987 = vmatpush1.bf16.msra.mxu0 0
    %1988 = vmatprep.mubr.bf16.mxu0 %v1654
    %1989 = vmatmul.mubr.bf16.gmra.mrb[0].mxu0 %v51
    %v1990 = vpop.f32.mrb[0].mxu0
    %v1991 = vadd.f32 %v1950, %v1990
    %v1992 = vpop.f32.mrb[0].mxu0
    %v1993 = vadd.f32 %v1952, %v1992
    %v1994 = vpop.f32.mrb[0].mxu0
    %v1995 = vpop.f32.mrb[0].mxu0
    %1996 = vdwg.mxu0
    %v1997 = vld [vmem:[%s3] sm:$0xf]
    %v1998 = vld [vmem:[%s4] sm:$0xf]
    %v1999 = vld [vmem:[%s2] sm:$0xf]
    %v2000 = vrot.slane %v1827, 4
    %v2001 = vadd.f32 %v1827, %v2000
    %v2002 = vrot.slane %v2001, 2
    %v2003 = vadd.f32 %v2001, %v2002
    %v2004 = vrot.slane %v2003, 1
    %v2005 = vadd.f32 %v2003, %v2004
    %v2006 = vrot.slane %v1829, 4
    %v2007 = vadd.f32 %v1829, %v2006
    %v2008 = vrot.slane %v2007, 2
    %v2009 = vadd.f32 %v2007, %v2008
    %v2010 = vrot.slane %v2009, 1
    %v2011 = vadd.f32 %v2009, %v2010
    %v2012 = vrot.slane %v1991, 4
    %v2013 = vadd.f32 %v1991, %v2012
    %v2014 = vrot.slane %v2013, 2
    %v2015 = vadd.f32 %v2013, %v2014
    %v2016 = vrot.slane %v2015, 1
    %v2017 = vadd.f32 %v2015, %v2016
    %vm2018 = vcmask 130048
    %v2019 = vsel %vm2018, %v1993, 0.0
    %v2020 = vrot.slane %v2019, 4
    %v2021 = vadd.f32 %v2019, %v2020
    %v2022 = vrot.slane %v2021, 2
    %v2023 = vadd.f32 %v2021, %v2022
    %v2024 = vrot.slane %v2023, 1
    %v2025 = vadd.f32 %v2023, %v2024
    %v2026 = vmul.f32 %v1827, %v1827
    %v2027 = vmul.f32 %v1829, %v1829
    %v2028 = vmul.f32 %v1991, %v1991
    %v2029 = vmul.f32 %v1993, %v1993
    %v2030 = vrot.slane %v2026, 4
    %v2031 = vadd.f32 %v2026, %v2030
    %v2032 = vrot.slane %v2031, 2
    %v2033 = vadd.f32 %v2031, %v2032
    %v2034 = vrot.slane %v2033, 1
    %v2035 = vadd.f32 %v2033, %v2034
    %v2036 = vrot.slane %v2027, 4
    %v2037 = vadd.f32 %v2027, %v2036
    %v2038 = vrot.slane %v2037, 2
    %v2039 = vadd.f32 %v2037, %v2038
    %v2040 = vrot.slane %v2039, 1
    %v2041 = vadd.f32 %v2039, %v2040
    %v2042 = vrot.slane %v2028, 4
    %v2043 = vadd.f32 %v2028, %v2042
    %v2044 = vrot.slane %v2043, 2
    %v2045 = vadd.f32 %v2043, %v2044
    %v2046 = vrot.slane %v2045, 1
    %v2047 = vadd.f32 %v2045, %v2046
    %v2048 = vsel %vm2018, %v2029, 0.0
    %v2049 = vrot.slane %v2048, 4
    %v2050 = vadd.f32 %v2048, %v2049
    %v2051 = vrot.slane %v2050, 2
    %v2052 = vadd.f32 %v2050, %v2051
    %v2053 = vrot.slane %v2052, 1
    %v2054 = vadd.f32 %v2052, %v2053
    %v2055 = vmul.f32 %v2005, 0.125
    %v2056 = vmul.f32 %v2011, 0.125
    %v2057 = vmul.f32 %v2017, 0.125
    %v2058 = vmul.f32 %v2025, 0.125
    %v2059 = vmul.f32 %v2035, 0.125
    %v2060 = vmul.f32 %v2041, 0.125
    %v2061 = vmul.f32 %v2047, 0.125
    %v2062 = vmul.f32 %v2054, 0.125
    %v2063 = vmul.f32 %v2055, %v2055
    %v2064 = vmul.f32 %v2056, %v2056
    %v2065 = vmul.f32 %v2057, %v2057
    %v2066 = vmul.f32 %v2058, %v2058
    %v2067 = vsub.f32 %v2059, %v2063
    %v2068 = vsub.f32 %v2060, %v2064
    %v2069 = vsub.f32 %v2061, %v2065
    %v2070 = vsub.f32 %v2062, %v2066
    %v2071 = vmax.f32 %v2067, 0.0
    %v2072 = vmax.f32 %v2068, 0.0
    %v2073 = vmax.f32 %v2069, 0.0
    %v2074 = vmax.f32 %v2070, 0.0
    %v2075 = vmul.f32 %v1999, %v1999
    %v2077 = vlaneseq
    %v2078 = vshrl.u32 %v2077, 7
    %v2079 = vsub.s32 0, %v2078
    %v2080 = vrot.slane %v2075, %v2079
    %v2081 = vlaneseq
    %v2082 = vshrl.u32 %v2081, 7
    %v2083 = vsub.s32 1, %v2082
    %v2084 = vrot.slane %v2075, %v2083
    %v2085 = vlaneseq
    %v2086 = vshrl.u32 %v2085, 7
    %v2087 = vsub.s32 2, %v2086
    %v2088 = vrot.slane %v2075, %v2087
    %v2089 = vlaneseq
    %v2090 = vshrl.u32 %v2089, 7
    %v2091 = vsub.s32 3, %v2090
    %v2092 = vrot.slane %v2075, %v2091
    %v2097 = vmul.f32 %v2071, %v2080
    %v2098 = vmul.f32 %v2072, %v2084
    %v2099 = vmul.f32 %v2073, %v2088
    %v2100 = vmul.f32 %v2074, %v2092
    %v2101 = vmul.f32 %v1999, %v1997
    %v2102 = vadd.f32 %v2097, 1e-05
    %v2103 = vadd.f32 %v2098, 1e-05
    %v2104 = vadd.f32 %v2099, 1e-05
    %v2105 = vadd.f32 %v2100, 1e-05
    %v2106 = vrsqrt.pop %v2102
    %v2107 = vrsqrt.pop %v2103
    %v2108 = vrsqrt.pop %v2104
    %v2109 = vrsqrt.pop %v2105
    %v2114 = vcombine.low %v2106, %v2107
    %v2115 = vcombine.low %v2108, %v2109
    %v2117 = vunpack.c.l.s4 1966171168
    %v2118 = vunpack.c.0.s8 %v2117
    %v2119 = vlaneseq
    %v2120 = vshrl.u32 %v2119, 7
    %v2121 = vsub.s32 %v2118, %v2120
    %v2122 = vrot.slane %v2114, %v2121
    %v2124 = vunpack.c.l.s4 1966171168
    %v2125 = vunpack.c.0.s8 %v2124
    %v2126 = vlaneseq
    %v2127 = vshrl.u32 %v2126, 7
    %v2128 = vsub.s32 %v2125, %v2127
    %v2129 = vrot.slane %v2115, %v2128
    %v2130 = vcombine.low %v2122, %v2129
    %v2132 = vunpack.c.l.s4 1966171168
    %v2133 = vunpack.c.0.s8 %v2132
    %v2134 = vlaneseq
    %v2135 = vshrl.u32 %v2134, 7
    %v2136 = vsub.s32 %v2133, %v2135
    %v2137 = vrot.slane %v2130, %v2136
    %v2139 = vmul.f32 %v2101, %v2137
    %v2141 = vlaneseq
    %v2142 = vshrl.u32 %v2141, 7
    %v2143 = vsub.s32 0, %v2142
    %v2144 = vrot.slane %v2139, %v2143
    %v2145 = vlaneseq
    %v2146 = vshrl.u32 %v2145, 7
    %v2147 = vsub.s32 1, %v2146
    %v2148 = vrot.slane %v2139, %v2147
    %v2149 = vlaneseq
    %v2150 = vshrl.u32 %v2149, 7
    %v2151 = vsub.s32 2, %v2150
    %v2152 = vrot.slane %v2139, %v2151
    %v2153 = vlaneseq
    %v2154 = vshrl.u32 %v2153, 7
    %v2155 = vsub.s32 3, %v2154
    %v2156 = vrot.slane %v2139, %v2155
    %v2161 = vmul.f32 %v2055, %v2144
    %v2162 = vmul.f32 %v2056, %v2148
    %v2163 = vmul.f32 %v2057, %v2152
    %v2164 = vmul.f32 %v2058, %v2156
    %v2169 = vcombine.low %v2161, %v2162
    %v2170 = vcombine.low %v2163, %v2164
    %v2172 = vunpack.c.l.s4 1966171168
    %v2173 = vunpack.c.0.s8 %v2172
    %v2174 = vlaneseq
    %v2175 = vshrl.u32 %v2174, 7
    %v2176 = vsub.s32 %v2173, %v2175
    %v2177 = vrot.slane %v2169, %v2176
    %v2179 = vunpack.c.l.s4 1966171168
    %v2180 = vunpack.c.0.s8 %v2179
    %v2181 = vlaneseq
    %v2182 = vshrl.u32 %v2181, 7
    %v2183 = vsub.s32 %v2180, %v2182
    %v2184 = vrot.slane %v2170, %v2183
    %v2185 = vcombine.low %v2177, %v2184
    %v2187 = vunpack.c.l.s4 1966171168
    %v2188 = vunpack.c.0.s8 %v2187
    %v2189 = vlaneseq
    %v2190 = vshrl.u32 %v2189, 7
    %v2191 = vsub.s32 %v2188, %v2190
    %v2192 = vrot.slane %v2185, %v2191
    %v2194 = vsub.f32 %v1998, %v2192
    %v2195 = vmul.f32 %v1827, %v2144
    %v2196 = vmul.f32 %v1829, %v2148
    %v2197 = vmul.f32 %v1991, %v2152
    %v2198 = vmul.f32 %v1993, %v2156
    %v2200 = vlaneseq
    %v2201 = vshrl.u32 %v2200, 7
    %v2202 = vsub.s32 0, %v2201
    %v2203 = vrot.slane %v2194, %v2202
    %v2204 = vlaneseq
    %v2205 = vshrl.u32 %v2204, 7
    %v2206 = vsub.s32 1, %v2205
    %v2207 = vrot.slane %v2194, %v2206
    %v2208 = vlaneseq
    %v2209 = vshrl.u32 %v2208, 7
    %v2210 = vsub.s32 2, %v2209
    %v2211 = vrot.slane %v2194, %v2210
    %v2212 = vlaneseq
    %v2213 = vshrl.u32 %v2212, 7
    %v2214 = vsub.s32 3, %v2213
    %v2215 = vrot.slane %v2194, %v2214
    %v2220 = vadd.f32 %v2195, %v2203
    %v2221 = vadd.f32 %v2196, %v2207
    %v2222 = vadd.f32 %v2197, %v2211
    %v2223 = vadd.f32 %v2198, %v2215
    %v2224 = vmax.f32 %v2220, 0.0
    %v2225 = vmax.f32 %v2221, 0.0
    %v2226 = vmax.f32 %v2222, 0.0
    %v2227 = vmax.f32 %v2223, 0.0
    %v2228 = vpack.c.bf16 %v2224, %v2224
    %v2229 = vpack.c.bf16 %v2225, %v2225
    %v2230 = vpack.c.bf16 %v2226, %v2226
    %v2231 = vpack.c.bf16 %v2227, %v2227
    %v2232 = vld [vmem:[%s5] sm:$0xf]
    %v2233 = vld [vmem:[%s5 + $0x4] sm:$0xf]
    %v2234 = vld [vmem:[%s5 + $0x8] sm:$0xf]
    %v2235 = vld [vmem:[%s5 + $0xc] sm:$0xf]
    %v2236 = vld [vmem:[%s5 + $0x10] sm:$0xf]
    %v2237 = vld [vmem:[%s5 + $0x14] sm:$0xf]
    %v2238 = vld [vmem:[%s5 + $0x18] sm:$0xf]
    %v2239 = vld [vmem:[%s5 + $0x1c] sm:$0xf]
    %v2240 = vld [vmem:[%s5 + $0x20] sm:$0xf]
    %v2241 = vld [vmem:[%s5 + $0x24] sm:$0xf]
    %v2242 = vld [vmem:[%s5 + $0x28] sm:$0xf]
    %v2243 = vld [vmem:[%s5 + $0x2c] sm:$0xf]
    %v2244 = vld [vmem:[%s5 + $0x30] sm:$0xf]
    %v2245 = vld [vmem:[%s5 + $0x34] sm:$0xf]
    %v2246 = vld [vmem:[%s5 + $0x38] sm:$0xf]
    %v2247 = vld [vmem:[%s5 + $0x3c] sm:$0xf]
    %v2248 = vld [vmem:[%s5 + $0x40] sm:$0xf]
    %v2249 = vld [vmem:[%s5 + $0x44] sm:$0xf]
    %v2250 = vld [vmem:[%s5 + $0x48] sm:$0xf]
    %v2251 = vld [vmem:[%s5 + $0x4c] sm:$0xf]
    %v2252 = vld [vmem:[%s5 + $0x50] sm:$0xf]
    %v2253 = vld [vmem:[%s5 + $0x54] sm:$0xf]
    %v2254 = vld [vmem:[%s5 + $0x58] sm:$0xf]
    %v2255 = vld [vmem:[%s5 + $0x5c] sm:$0xf]
    %v2256 = vld [vmem:[%s5 + $0x60] sm:$0xf]
    %v2257 = vld [vmem:[%s5 + $0x64] sm:$0xf]
    %v2258 = vld [vmem:[%s5 + $0x68] sm:$0xf]
    %v2259 = vld [vmem:[%s5 + $0x6c] sm:$0xf]
    %v2260 = vld [vmem:[%s5 + $0x70] sm:$0xf]
    %v2261 = vld [vmem:[%s5 + $0x74] sm:$0xf]
    %v2262 = vld [vmem:[%s5 + $0x78] sm:$0xf]
    %v2263 = vld [vmem:[%s5 + $0x7c] sm:$0xf]
    %v2264 = vld [vmem:[%s5 + $0x80] sm:$0xf]
    %v2265 = vld [vmem:[%s5 + $0x84] sm:$0xf]
    %v2266 = vld [vmem:[%s5 + $0x88] sm:$0xf]
    %v2267 = vld [vmem:[%s5 + $0x8c] sm:$0xf]
    %v2268 = vld [vmem:[%s5 + $0x90] sm:$0xf]
    %v2269 = vld [vmem:[%s5 + $0x94] sm:$0xf]
    %v2270 = vld [vmem:[%s5 + $0x98] sm:$0xf]
    %v2271 = vld [vmem:[%s5 + $0x9c] sm:$0xf]
    %v2272 = vld [vmem:[%s5 + $0xa0] sm:$0xf]
    %v2273 = vld [vmem:[%s5 + $0xa4] sm:$0xf]
    %v2274 = vld [vmem:[%s5 + $0xa8] sm:$0xf]
    %v2275 = vld [vmem:[%s5 + $0xac] sm:$0xf]
    %v2276 = vld [vmem:[%s5 + $0xb0] sm:$0xf]
    %v2277 = vld [vmem:[%s5 + $0xb4] sm:$0xf]
    %v2278 = vld [vmem:[%s5 + $0xb8] sm:$0xf]
    %v2279 = vld [vmem:[%s5 + $0xbc] sm:$0xf]
    %v2280 = vld [vmem:[%s5 + $0xc0] sm:$0xf]
    %v2281 = vld [vmem:[%s5 + $0xc4] sm:$0xf]
    %v2332 = vunpack.c.l.b16 %v2232
    %v2333 = vunpack.c.l.b16 %v2233
    %v2334 = vunpack.c.l.b16 %v2234
    %v2335 = vunpack.c.l.b16 %v2235
    %v2336 = vunpack.c.l.b16 %v2236
    %v2337 = vunpack.c.l.b16 %v2237
    %v2338 = vunpack.c.l.b16 %v2238
    %v2339 = vunpack.c.l.b16 %v2239
    %v2340 = vunpack.c.l.b16 %v2240
    %v2341 = vunpack.c.l.b16 %v2241
    %v2342 = vunpack.c.l.b16 %v2242
    %v2343 = vunpack.c.l.b16 %v2243
    %v2344 = vunpack.c.l.b16 %v2244
    %v2345 = vunpack.c.l.b16 %v2245
    %v2346 = vunpack.c.l.b16 %v2246
    %v2347 = vunpack.c.l.b16 %v2247
    %v2348 = vunpack.c.l.b16 %v2248
    %v2349 = vunpack.c.l.b16 %v2249
    %v2350 = vunpack.c.l.b16 %v2250
    %v2351 = vunpack.c.l.b16 %v2251
    %v2352 = vunpack.c.l.b16 %v2252
    %v2353 = vunpack.c.l.b16 %v2253
    %v2354 = vunpack.c.l.b16 %v2254
    %v2355 = vunpack.c.l.b16 %v2255
    %v2356 = vunpack.c.l.b16 %v2256
    %v2357 = vunpack.c.l.b16 %v2257
    %v2358 = vunpack.c.l.b16 %v2258
    %v2359 = vunpack.c.l.b16 %v2259
    %v2360 = vunpack.c.l.b16 %v2260
    %v2361 = vunpack.c.l.b16 %v2261
    %v2362 = vunpack.c.l.b16 %v2262
    %v2363 = vunpack.c.l.b16 %v2263
    %v2364 = vunpack.c.l.b16 %v2264
    %v2365 = vunpack.c.l.b16 %v2265
    %v2366 = vunpack.c.l.b16 %v2266
    %v2367 = vunpack.c.l.b16 %v2267
    %v2368 = vunpack.c.l.b16 %v2268
    %v2369 = vunpack.c.l.b16 %v2269
    %v2370 = vunpack.c.l.b16 %v2270
    %v2371 = vunpack.c.l.b16 %v2271
    %v2372 = vunpack.c.l.b16 %v2272
    %v2373 = vunpack.c.l.b16 %v2273
    %v2374 = vunpack.c.l.b16 %v2274
    %v2375 = vunpack.c.l.b16 %v2275
    %v2376 = vunpack.c.l.b16 %v2276
    %v2377 = vunpack.c.l.b16 %v2277
    %v2378 = vunpack.c.l.b16 %v2278
    %v2379 = vunpack.c.l.b16 %v2279
    %v2380 = vunpack.c.l.b16 %v2280
    %v2381 = vunpack.c.l.b16 %v2281
    %v2382 = vpack.c.b16 %v2333, %v2332
    %v2383 = vpack.c.b16 %v2335, %v2334
    %v2384 = vpack.c.b16 %v2337, %v2336
    %v2385 = vpack.c.b16 %v2339, %v2338
    %v2386 = vpack.c.b16 %v2341, %v2340
    %v2387 = vpack.c.b16 %v2343, %v2342
    %v2388 = vpack.c.b16 %v2345, %v2344
    %v2389 = vpack.c.b16 %v2347, %v2346
    %v2390 = vpack.c.b16 %v2349, %v2348
    %v2391 = vpack.c.b16 %v2351, %v2350
    %v2392 = vpack.c.b16 %v2353, %v2352
    %v2393 = vpack.c.b16 %v2355, %v2354
    %v2394 = vpack.c.b16 %v2357, %v2356
    %v2395 = vpack.c.b16 %v2359, %v2358
    %v2396 = vpack.c.b16 %v2361, %v2360
    %v2397 = vpack.c.b16 %v2363, %v2362
    %v2398 = vpack.c.b16 %v2365, %v2364
    %v2399 = vpack.c.b16 %v2367, %v2366
    %v2400 = vpack.c.b16 %v2369, %v2368
    %v2401 = vpack.c.b16 %v2371, %v2370
    %v2402 = vpack.c.b16 %v2373, %v2372
    %v2403 = vpack.c.b16 %v2375, %v2374
    %v2404 = vpack.c.b16 %v2377, %v2376
    %v2405 = vpack.c.b16 %v2379, %v2378
    %v2406 = vpack.c.b16 %v2381, %v2380
    %v2433 = vsel %vm2018, %v2231, 0
    %2435 = vmatprep.subr.bf16.mxu0 0
    %2436 = vmatpush1.bf16.msra.mxu0 %v2382
    %2437 = vmatprep.subr.bf16.mxu0 0
    %2438 = vmatpush1.bf16.msra.mxu0 %v2383
    %2439 = vmatprep.subr.bf16.mxu0 0
    %2440 = vmatpush1.bf16.msra.mxu0 %v2384
    %2441 = vmatprep.subr.bf16.mxu0 0
    %2442 = vmatpush1.bf16.msra.mxu0 %v2385
    %2443 = vmatprep.subr.bf16.mxu0 0
    %2444 = vmatpush1.bf16.msra.mxu0 %v2386
    %2445 = vmatprep.subr.bf16.mxu0 0
    %2446 = vmatpush1.bf16.msra.mxu0 %v2387
    %2447 = vmatprep.subr.bf16.mxu0 0
    %2448 = vmatpush1.bf16.msra.mxu0 %v2388
    %2449 = vmatprep.subr.bf16.mxu0 0
    %2450 = vmatpush1.bf16.msra.mxu0 %v2389
    %2451 = vmatprep.subr.bf16.mxu0 0
    %2452 = vmatpush1.bf16.msra.mxu0 %v2390
    %2453 = vmatprep.subr.bf16.mxu0 0
    %2454 = vmatpush1.bf16.msra.mxu0 %v2391
    %2455 = vmatprep.subr.bf16.mxu0 0
    %2456 = vmatpush1.bf16.msra.mxu0 %v2392
    %2457 = vmatprep.subr.bf16.mxu0 0
    %2458 = vmatpush1.bf16.msra.mxu0 %v2393
    %2459 = vmatprep.subr.bf16.mxu0 0
    %2460 = vmatpush1.bf16.msra.mxu0 %v2394
    %2461 = vmatprep.subr.bf16.mxu0 0
    %2462 = vmatpush1.bf16.msra.mxu0 %v2395
    %2463 = vmatprep.subr.bf16.mxu0 0
    %2464 = vmatpush1.bf16.msra.mxu0 %v2396
    %2465 = vmatprep.subr.bf16.mxu0 0
    %2466 = vmatpush1.bf16.msra.mxu0 %v2397
    %2467 = vmatprep.mubr.bf16.mxu0 %v2229
    %2468 = vmatmul.mubr.bf16.gmra.mrb[0].mxu0 %v2228
    %v2469 = vpop.f32.mrb[0].mxu0
    %v2470 = vadd.f32 0.0, %v2469
    %v2471 = vpop.f32.mrb[0].mxu0
    %v2472 = vpop.f32.mrb[0].mxu0
    %v2473 = vpop.f32.mrb[0].mxu0
    %2474 = vdwg.mxu0
    %2475 = vmatprep.subr.bf16.mxu0 0
    %2476 = vmatpush1.bf16.msra.mxu0 %v2398
    %2477 = vmatprep.subr.bf16.mxu0 0
    %2478 = vmatpush1.bf16.msra.mxu0 %v2399
    %2479 = vmatprep.subr.bf16.mxu0 0
    %2480 = vmatpush1.bf16.msra.mxu0 %v2400
    %2481 = vmatprep.subr.bf16.mxu0 0
    %2482 = vmatpush1.bf16.msra.mxu0 %v2401
    %2483 = vmatprep.subr.bf16.mxu0 0
    %2484 = vmatpush1.bf16.msra.mxu0 %v2402
    %2485 = vmatprep.subr.bf16.mxu0 0
    %2486 = vmatpush1.bf16.msra.mxu0 %v2403
    %2487 = vmatprep.subr.bf16.mxu0 0
    %2488 = vmatpush1.bf16.msra.mxu0 %v2404
    %2489 = vmatprep.subr.bf16.mxu0 0
    %2490 = vmatpush1.bf16.msra.mxu0 %v2405
    %2491 = vmatprep.subr.bf16.mxu0 0
    %2492 = vmatpush1.bf16.msra.mxu0 %v2406
    %2493 = vmatprep.subr.bf16.mxu0 0
    %2494 = vmatpush1.bf16.msra.mxu0 0
    %2495 = vmatprep.subr.bf16.mxu0 0
    %2496 = vmatpush1.bf16.msra.mxu0 0
    %2497 = vmatprep.subr.bf16.mxu0 0
    %2498 = vmatpush1.bf16.msra.mxu0 0
    %2499 = vmatprep.subr.bf16.mxu0 0
    %2500 = vmatpush1.bf16.msra.mxu0 0
    %2501 = vmatprep.subr.bf16.mxu0 0
    %2502 = vmatpush1.bf16.msra.mxu0 0
    %2503 = vmatprep.subr.bf16.mxu0 0
    %2504 = vmatpush1.bf16.msra.mxu0 0
    %2505 = vmatprep.subr.bf16.mxu0 0
    %2506 = vmatpush1.bf16.msra.mxu0 0
    %2507 = vmatprep.mubr.bf16.mxu0 %v2433
    %2508 = vmatmul.mubr.bf16.gmra.mrb[0].mxu0 %v2230
    %v2509 = vpop.f32.mrb[0].mxu0
    %v2510 = vadd.f32 %v2470, %v2509
    %v2511 = vpop.f32.mrb[0].mxu0
    %v2512 = vpop.f32.mrb[0].mxu0
    %v2513 = vpop.f32.mrb[0].mxu0
    %2514 = vdwg.mxu0
    %v2515 = vld [vmem:[%s6] sm:$0x1]
    %v2516 = vld [vmem:[%s7] sm:$0x1]
    %vm2517 = vcmask 408576
    %v2518 = vsel %vm2517, %v2510, 0.0
    %v2519 = vrot.slane %v2518, 4
    %v2520 = vadd.f32 %v2518, %v2519
    %v2521 = vrot.slane %v2520, 2
    %v2522 = vadd.f32 %v2520, %v2521
    %v2523 = vrot.slane %v2522, 1
    %v2524 = vadd.f32 %v2522, %v2523
    %v2525 = vmul.f32 %v2510, %v2510
    %v2526 = vsel %vm2517, %v2525, 0.0
    %v2527 = vrot.slane %v2526, 4
    %v2528 = vadd.f32 %v2526, %v2527
    %v2529 = vrot.slane %v2528, 2
    %v2530 = vadd.f32 %v2528, %v2529
    %v2531 = vrot.slane %v2530, 1
    %v2532 = vadd.f32 %v2530, %v2531
    %v2533 = vmul.f32 %v2524, 0.125
    %v2534 = vmul.f32 %v2532, 0.125
    %v2535 = vmul.f32 %v2533, %v2533
    %v2536 = vsub.f32 %v2534, %v2535
    %v2537 = vmax.f32 %v2536, 0.0
    %v2538 = vadd.f32 %v2537, 1e-05
    %v2539 = vrsqrt.pop %v2538
    %v2540 = vmul.f32 %v2515, %v2539
    %v2541 = vmul.f32 %v2533, %v2540
    %v2542 = vsub.f32 %v2516, %v2541
    %v2544 = vlaneseq
    %v2545 = vshrl.u32 %v2544, 7
    %v2546 = vsub.s32 0, %v2545
    %v2547 = vrot.slane %v2540, %v2546
    %v2549 = vmul.f32 %v2510, %v2547
    %v2551 = vlaneseq
    %v2552 = vshrl.u32 %v2551, 7
    %v2553 = vsub.s32 0, %v2552
    %v2554 = vrot.slane %v2542, %v2553
    %v2556 = vadd.f32 %v2549, %v2554
    %v2557 = vmax.f32 %v2556, 0.0
    %v2558 = vpack.c.bf16 %v2557, %v2557
    %v2559 = vld [vmem:[%s8] sm:$0xf]
    %v2560 = vld [vmem:[%s8 + $0x4] sm:$0xf]
    %v2561 = vld [vmem:[%s8 + $0x8] sm:$0xf]
    %v2562 = vld [vmem:[%s8 + $0xc] sm:$0xf]
    %v2563 = vld [vmem:[%s8 + $0x10] sm:$0xf]
    %v2564 = vld [vmem:[%s8 + $0x14] sm:$0xf]
    %v2565 = vld [vmem:[%s8 + $0x18] sm:$0x1]
    %v2566 = vld [vmem:[%s9] sm:$0x1]
    %v2568 = vlaneseq
    %v2569 = vshrl.u32 %v2568, 7
    %v2570 = vsub.s32 0, %v2569
    %v2571 = vrot.slane %v2566, %v2570
    %v2580 = vunpack.c.l.b16 %v2559
    %v2581 = vunpack.c.l.b16 %v2560
    %v2582 = vunpack.c.l.b16 %v2561
    %v2583 = vunpack.c.l.b16 %v2562
    %v2584 = vunpack.c.l.b16 %v2563
    %v2585 = vunpack.c.l.b16 %v2564
    %v2586 = vunpack.c.l.b16 %v2565
    %v2587 = vpack.c.b16 %v2581, %v2580
    %v2588 = vpack.c.b16 %v2583, %v2582
    %v2589 = vpack.c.b16 %v2585, %v2584
    %v2590 = vpack.c.b16 %v2586, %v2586
    %v2595 = vsel %vm2517, %v2558, 0
    %vm2597 = vcmask 1040384
    %v2599 = vsel %vm2597, %v2590, 0
    %2601 = vmatprep.subr.bf16.mxu0 0
    %2602 = vmatpush1.bf16.msra.mxu0 %v2587
    %2603 = vmatprep.subr.bf16.mxu0 0
    %2604 = vmatpush1.bf16.msra.mxu0 %v2588
    %2605 = vmatprep.subr.bf16.mxu0 0
    %2606 = vmatpush1.bf16.msra.mxu0 %v2589
    %2607 = vmatprep.subr.bf16.mxu0 0
    %2608 = vmatpush1.bf16.msra.mxu0 %v2599
    %2609 = vmatprep.subr.bf16.mxu0 0
    %2610 = vmatpush1.bf16.msra.mxu0 0
    %2611 = vmatprep.subr.bf16.mxu0 0
    %2612 = vmatpush1.bf16.msra.mxu0 0
    %2613 = vmatprep.subr.bf16.mxu0 0
    %2614 = vmatpush1.bf16.msra.mxu0 0
    %2615 = vmatprep.subr.bf16.mxu0 0
    %2616 = vmatpush1.bf16.msra.mxu0 0
    %2617 = vmatprep.subr.bf16.mxu0 0
    %2618 = vmatpush1.bf16.msra.mxu0 0
    %2619 = vmatprep.subr.bf16.mxu0 0
    %2620 = vmatpush1.bf16.msra.mxu0 0
    %2621 = vmatprep.subr.bf16.mxu0 0
    %2622 = vmatpush1.bf16.msra.mxu0 0
    %2623 = vmatprep.subr.bf16.mxu0 0
    %2624 = vmatpush1.bf16.msra.mxu0 0
    %2625 = vmatprep.subr.bf16.mxu0 0
    %2626 = vmatpush1.bf16.msra.mxu0 0
    %2627 = vmatprep.subr.bf16.mxu0 0
    %2628 = vmatpush1.bf16.msra.mxu0 0
    %2629 = vmatprep.subr.bf16.mxu0 0
    %2630 = vmatpush1.bf16.msra.mxu0 0
    %2631 = vmatprep.subr.bf16.mxu0 0
    %2632 = vmatpush1.bf16.msra.mxu0 0
    %2633 = vmatprep.mubr.bf16.mxu0 0
    %2634 = vmatmul.mubr.bf16.gmra.mrb[0].mxu0 %v2595
    %v2635 = vpop.f32.mrb[0].mxu0
    %v2636 = vadd.f32 %v2571, %v2635
    %v2637 = vpop.f32.mrb[0].mxu0
    %v2638 = vpop.f32.mrb[0].mxu0
    %v2639 = vpop.f32.mrb[0].mxu0
    %2640 = vdwg.mxu0
    %vm2641 = vcmask 80896
    %2642 = vst.msk [vmem:[#allocation2] sm:$0xff] %vm2641, %v2636
    // Predicated region
    $region42: #{tpu_custom_call.1} parent=1 // pred_check
      _
    $region43: #{tpu_custom_call.1} parent=1 // pred_check_branch
      %2644 = sbr.rel (0) target = $region45
    $region44: #{tpu_custom_call.1} parent=1 // pred_region
      %s2646 = ssub.s32 128, 128
      %2647 = vsyncadd [#allocation3], %s2646
      %s2649 = sshll.u32 [#allocation2], 4
      %s2650 = int_to_ptr.vmem [resolvable:$true] %s2649
      %2652 = dma.vmem_to_hbm [thread:$0]  %s2650, 128, %s10, [#allocation3]
    $region45: #{tpu_custom_call.1} parent=1 // pred_fallthru
      _
    // Predicated region
    $region46: #{tpu_custom_call.1} parent=1 // pred_check
      _
    $region47: #{tpu_custom_call.1} parent=1 // pred_check_branch
      %2654 = sbr.rel (0) target = $region49
    $region48: #{tpu_custom_call.1} parent=1 // pred_region
      %2655 = dma.done [#allocation3], 128
    $region49: #{tpu_custom_call.1} parent=1 // pred_fallthru
      _
    %2656 = vsyncpa [#allocation3], 1

</llo_original>
